<compile_context>
chip_gen: v7x
topology: tpu7x:2x2x1
jax: 0.10.0
libtpu: 0.0.40
codegen_flags: <defaults>
</compile_context>

<pallas_src>
import math
import functools

import jax
import jax.numpy as jnp
from jax.experimental import pallas as pl
from jax.experimental.pallas import tpu as pltpu

# ----------------------------- problem sizes --------------------------------
B = 2                 # batch
S = 8                 # seq_len
BS = B * S
D_IN = 32             # input_dim
H = 32                # hidden_dim
NUM_HEADS = 4
NUM_LAYERS = 2
FF = 2 * H            # dim_feedforward = hidden_dim * 2
HD = H // NUM_HEADS
NKV = NUM_HEADS * BS  # expanded key/value axis: (head, batch, seq) flattened
OUT_PAD = 128         # lane-dense packed output width
LN_EPS = 1e-5
ROWS_PER_LAYER = 9    # bq bk bv outb ln1w ln1b ln2w ln2b ffb2
N_B32 = 2 + NUM_LAYERS * ROWS_PER_LAYER   # 20 pre-broadcast H-wide vectors


def _layernorm(z, w, b):
    mu = jnp.mean(z, axis=-1, keepdims=True)
    var = jnp.mean((z - mu) ** 2, axis=-1, keepdims=True)
    return (z - mu) * jax.lax.rsqrt(var + LN_EPS) * w + b


# ------------------------------- kernel --------------------------------------
def head_kernel(x_ref, wproc_ref, wqkv_ref, wao_ref, wff1_ref, wff2_ref,
                wout_ref, b32_ref, b64_ref, bout_ref,
                blk_kv_ref, blk_dn_ref, bbias_ref, y_ref):
    f32 = jnp.float32
    x = x_ref[...]                       # (BS, D_IN)
    blk_kv = blk_kv_ref[...]             # (NKV, H)   head mask for expanded K/V
    blk_dn = blk_dn_ref[...]             # (NKV, NKV) per-(head,batch) group mask
    bbias = bbias_ref[...]               # (BS, NKV)  0 in-batch / -1e9 cross-batch

    # rotation_processor: Linear -> ReLU -> Linear -> ReLU (dropout = identity)
    w1 = wproc_ref[0:D_IN, :]
    w2 = wproc_ref[D_IN:D_IN + H, :]
    h = jnp.maximum(jnp.dot(x, w1, preferred_element_type=f32) + b32_ref[0], 0.0)
    h = jnp.maximum(jnp.dot(h, w2, preferred_element_type=f32) + b32_ref[1], 0.0)

    for l in range(NUM_LAYERS):          # post-norm encoder layers
        base = 2 + l * ROWS_PER_LAYER

        # Q/K/V: three lane-aligned (H,H) matmuls; 1/sqrt(HD) folded into Q weight+bias.
        q = jnp.dot(h, wqkv_ref[3 * l + 0], preferred_element_type=f32) + b32_ref[base + 0]
        k = jnp.dot(h, wqkv_ref[3 * l + 1], preferred_element_type=f32) + b32_ref[base + 1]
        v = jnp.dot(h, wqkv_ref[3 * l + 2], preferred_element_type=f32) + b32_ref[base + 2]

        # Batched expanded-KV attention: row (n, b, j) of k_exp/v_exp holds
        # key/value (b, j) masked to head n's HD lanes.
        k_exp = jnp.concatenate([k] * NUM_HEADS, axis=0) * blk_kv     # (NKV, H)
        v_exp = jnp.concatenate([v] * NUM_HEADS, axis=0) * blk_kv     # (NKV, H)
        s = jax.lax.dot_general(q, k_exp, (((1,), (1,)), ((), ())),
                                preferred_element_type=f32)           # (BS, NKV)
        s = s + bbias                                   # mask cross-batch BEFORE the max
        s = s - jnp.max(s, axis=-1, keepdims=True)      # per-row shift -> exact softmax
        e = jnp.exp(s)                                  # cross-batch -> exactly 0
        denom = jnp.dot(e, blk_dn, preferred_element_type=f32)        # per-(head,batch) sums
        p = e * pl.reciprocal(denom + 1e-20, approx=True)             # eps: masked groups sum to 0
        attn = jnp.dot(p, v_exp, preferred_element_type=f32)          # (BS, H), heads lane-packed
        attn = jnp.dot(attn, wao_ref[l], preferred_element_type=f32) + b32_ref[base + 3]
        h = _layernorm(h + attn, b32_ref[base + 4], b32_ref[base + 5])

        # feed-forward block
        ff = jnp.maximum(jnp.dot(h, wff1_ref[l], preferred_element_type=f32)
                         + b64_ref[l], 0.0)
        ff = jnp.dot(ff, wff2_ref[l], preferred_element_type=f32) + b32_ref[base + 8]
        h = _layernorm(h + ff, b32_ref[base + 6], b32_ref[base + 7])

    # Single lane-dense output projection:
    #   cols 0:4 rotation, 4:7 angular velocity, 8:8+H features (identity block).
    y = jnp.dot(h, wout_ref[...], preferred_element_type=f32) + bout_ref[...]
    col = jax.lax.broadcasted_iota(jnp.int32, (BS, OUT_PAD), 1)
    rot_mask = col < 4
    ss = jnp.sum(jnp.where(rot_mask, y * y, 0.0), axis=-1, keepdims=True)
    y = jnp.where(rot_mask, y * jax.lax.rsqrt(ss + 1e-12), y)   # normalize quaternion cols only
    y_ref[...] = y                                              # one unmasked 128-lane store


# ------------------------------- wrapper --------------------------------------
_VMEM_SPEC = pl.BlockSpec(memory_space=pltpu.MemorySpace.VMEM)


@jax.jit
def rotation_head_forward(features, kp):
    x = features.reshape(BS, D_IN)          # batch stacked along sublanes

    args = (x, kp['wproc'], kp['wqkv'], kp['wao'], kp['wff1'], kp['wff2'],
            kp['wout'], kp['b32'], kp['b64'], kp['bout'],
            kp['blk_kv'], kp['blk_dn'], kp['bbias'])

    y = pl.pallas_call(
        head_kernel,
        out_shape=jax.ShapeDtypeStruct((BS, OUT_PAD), jnp.float32),
        in_specs=[_VMEM_SPEC] * len(args),
        out_specs=_VMEM_SPEC,
    )(*args)

    y = y.reshape(B, S, OUT_PAD)
    return {
        'rotation': y[..., 0:4],
        'angular_velocity': y[..., 4:7],
        'rotation_features': y[..., 8:8 + H],
    }


# --------------------------- parameter packing --------------------------------
def pack_params(p):
    """Pack the canonical (PyTorch-shaped) params into the 13 kernel inputs."""
    f32 = jnp.float32
    scale = 1.0 / math.sqrt(HD)

    wproc = jnp.concatenate([p['w1'], p['w2']], axis=0)                # (D_IN+H, H)

    # Separate Q/K/V weights (lane-aligned matmuls); fold softmax scale into Q.
    wq = p['inw'][:, :, 0:H] * scale
    wk = p['inw'][:, :, H:2 * H]
    wv = p['inw'][:, :, 2 * H:3 * H]
    wqkv = jnp.stack([wq, wk, wv], axis=1).reshape(NUM_LAYERS * 3, H, H)

    wout = jnp.zeros((H, OUT_PAD), f32)
    wout = wout.at[:, 0:4].set(p['w_rot'])
    wout = wout.at[:, 4:7].set(p['w_av'])
    wout = wout.at[:, 8:8 + H].set(jnp.eye(H, dtype=f32))              # features pass-through

    # All H-wide bias / LN vectors, pre-broadcast to (BS, H) so the kernel never
    # does a (1,n)->(BS,n) sublane broadcast on the critical path.
    rows32 = [p['b1'], p['b2']]
    for l in range(NUM_LAYERS):
        rows32 += [p['inb'][l, 0:H] * scale,          # bq (scale folded)
                   p['inb'][l, H:2 * H],              # bk
                   p['inb'][l, 2 * H:3 * H],          # bv
                   p['outb'][l],
                   p['ln1w'][l], p['ln1b'][l],
                   p['ln2w'][l], p['ln2b'][l],
                   p['ffb2'][l]]
    b32 = jnp.stack(rows32, axis=0).astype(f32)                        # (N_B32, H)
    b32 = jnp.broadcast_to(b32[:, None, :], (N_B32, BS, H)) + 0.0

    b64 = jnp.stack([p['ffb1'][l] for l in range(NUM_LAYERS)], axis=0).astype(f32)
    b64 = jnp.broadcast_to(b64[:, None, :], (NUM_LAYERS, BS, FF)) + 0.0

    bout_row = jnp.zeros((OUT_PAD,), f32)
    bout_row = bout_row.at[0:4].set(p['b_rot']).at[4:7].set(p['b_av'])
    bout = jnp.broadcast_to(bout_row[None, :], (BS, OUT_PAD)) + 0.0

    # Precomputed attention masks (feedback: don't rebuild with iota in-kernel).
    r = jnp.arange(NKV)                       # expanded axis index = n*BS + b*S + j
    hc = jnp.arange(H)
    blk_kv = ((r[:, None] // BS) == (hc[None, :] // HD)).astype(f32)   # (NKV, H)
    blk_dn = ((r[:, None] // S) == (r[None, :] // S)).astype(f32)      # (NKV, NKV)
    qr = jnp.arange(BS)
    bbias = jnp.where((qr[:, None] // S) == ((r[None, :] % BS) // S),
                      0.0, -1e9).astype(f32)                           # (BS, NKV)

    return dict(wproc=wproc, wqkv=wqkv, wao=p['outw'], wff1=p['ffw1'],
                wff2=p['ffw2'], wout=wout, b32=b32, b64=b64, bout=bout,
                blk_kv=blk_kv, blk_dn=blk_dn, bbias=bbias)


# --------------------------- deterministic params -----------------------------
def init_params(key):
    ks = jax.random.split(key, 8)

    def xavier(k, shape, gain=1.0):
        fan_in, fan_out = shape[-2], shape[-1]
        limit = gain * math.sqrt(6.0 / (fan_in + fan_out))
        return jax.random.uniform(k, shape, jnp.float32, -limit, limit)

    p = {}
    # rotation_processor: kaiming-normal (fan_out, relu), zero bias
    p['w1'] = jax.random.normal(ks[0], (D_IN, H), jnp.float32) * math.sqrt(2.0 / H)
    p['b1'] = jnp.zeros((H,), jnp.float32)
    p['w2'] = jax.random.normal(ks[1], (H, H), jnp.float32) * math.sqrt(2.0 / H)
    p['b2'] = jnp.zeros((H,), jnp.float32)
    # transformer encoder layers (stacked over NUM_LAYERS)
    p['inw'] = xavier(ks[2], (NUM_LAYERS, H, 3 * H))
    p['inb'] = jnp.zeros((NUM_LAYERS, 3 * H), jnp.float32)
    p['outw'] = xavier(ks[3], (NUM_LAYERS, H, H))
    p['outb'] = jnp.zeros((NUM_LAYERS, H), jnp.float32)
    p['ln1w'] = jnp.ones((NUM_LAYERS, H), jnp.float32)
    p['ln1b'] = jnp.zeros((NUM_LAYERS, H), jnp.float32)
    p['ln2w'] = jnp.ones((NUM_LAYERS, H), jnp.float32)
    p['ln2b'] = jnp.zeros((NUM_LAYERS, H), jnp.float32)
    p['ffw1'] = xavier(ks[4], (NUM_LAYERS, H, FF))
    p['ffb1'] = jnp.zeros((NUM_LAYERS, FF), jnp.float32)
    p['ffw2'] = xavier(ks[5], (NUM_LAYERS, FF, H))
    p['ffb2'] = jnp.zeros((NUM_LAYERS, H), jnp.float32)
    # output heads
    p['w_rot'] = xavier(ks[6], (H, 4), gain=0.1)
    p['b_rot'] = jnp.array([0.0, 0.0, 0.0, 1.0], jnp.float32)
    p['w_av'] = xavier(ks[7], (H, 3))
    p['b_av'] = jnp.zeros((3,), jnp.float32)
    return p


# --------------------------- pure-JAX reference -------------------------------
def reference_forward(features, p):
    hp = jax.lax.Precision.HIGHEST
    ein = functools.partial(jnp.einsum, precision=hp)
    h = jnp.maximum(ein('bsd,dh->bsh', features, p['w1']) + p['b1'], 0.0)
    h = jnp.maximum(ein('bsh,hk->bsk', h, p['w2']) + p['b2'], 0.0)
    for l in range(NUM_LAYERS):
        qkv = ein('bsh,hk->bsk', h, p['inw'][l]) + p['inb'][l]
        q, k, v = jnp.split(qkv, 3, axis=-1)
        q = q.reshape(B, S, NUM_HEADS, HD).transpose(0, 2, 1, 3)
        k = k.reshape(B, S, NUM_HEADS, HD).transpose(0, 2, 1, 3)
        v = v.reshape(B, S, NUM_HEADS, HD).transpose(0, 2, 1, 3)
        s = ein('bnqd,bnkd->bnqk', q, k) / math.sqrt(HD)
        attn = jax.nn.softmax(s, axis=-1)
        o = ein('bnqk,bnkd->bnqd', attn, v).transpose(0, 2, 1, 3).reshape(B, S, H)
        o = ein('bsh,hk->bsk', o, p['outw'][l]) + p['outb'][l]
        h = _layernorm(h + o, p['ln1w'][l], p['ln1b'][l])
        ff = jnp.maximum(ein('bsh,hf->bsf', h, p['ffw1'][l]) + p['ffb1'][l], 0.0)
        ff = ein('bsf,fh->bsh', ff, p['ffw2'][l]) + p['ffb2'][l]
        h = _layernorm(h + ff, p['ln2w'][l], p['ln2b'][l])
    rot = ein('bsh,ho->bso', h, p['w_rot']) + p['b_rot']
    rot = rot / (jnp.sqrt(jnp.sum(rot * rot, axis=-1, keepdims=True)) + 1e-8)
    av = ein('bsh,ho->bso', h, p['w_av']) + p['b_av']
    return {'rotation': rot, 'angular_velocity': av, 'rotation_features': h}


# ----------------------------------- main -------------------------------------
if __name__ == "__main__":
    key = jax.random.PRNGKey(0)
    pkey, xkey = jax.random.split(key)
    params = init_params(pkey)
    features = jax.random.normal(xkey, (B, S, D_IN), jnp.float32)

    packed = pack_params(params)
    out = rotation_head_forward(features, packed)
    jax.block_until_ready(out)

    ref = reference_forward(features, params)
    for name in ('rotation', 'angular_velocity', 'rotation_features'):
        assert out[name].shape == ref[name].shape, name
        assert jnp.allclose(out[name], ref[name], atol=2e-2, rtol=2e-2), name

    print("KERNEL_OK")
</pallas_src>

<mosaic_0001>
module attributes {stable_mosaic.version = 11 : i64} {
  func.func @head_kernel(%arg0: memref<16x32xf32, #tpu.memory_space<vmem>>, %arg1: memref<64x32xf32, #tpu.memory_space<vmem>>, %arg2: memref<6x32x32xf32, #tpu.memory_space<vmem>>, %arg3: memref<2x32x32xf32, #tpu.memory_space<vmem>>, %arg4: memref<2x32x64xf32, #tpu.memory_space<vmem>>, %arg5: memref<2x64x32xf32, #tpu.memory_space<vmem>>, %arg6: memref<32x128xf32, #tpu.memory_space<vmem>>, %arg7: memref<20x16x32xf32, #tpu.memory_space<vmem>>, %arg8: memref<2x16x64xf32, #tpu.memory_space<vmem>>, %arg9: memref<16x128xf32, #tpu.memory_space<vmem>>, %arg10: memref<64x32xf32, #tpu.memory_space<vmem>>, %arg11: memref<64x64xf32, #tpu.memory_space<vmem>>, %arg12: memref<16x64xf32, #tpu.memory_space<vmem>>, %arg13: memref<16x128xf32, #tpu.memory_space<vmem>>) attributes {dimension_semantics = [], scalar_prefetch = 0 : i64, scratch_operands = 0 : i64, tpu.core_type = #tpu.core_type<tc>} {
    %c0 = arith.constant 0 : index
    %c0_0 = arith.constant 0 : index
    %0 = vector.load %arg0[%c0, %c0_0] : memref<16x32xf32, #tpu.memory_space<vmem>>, vector<16x32xf32>
    %c0_1 = arith.constant 0 : index
    %c0_2 = arith.constant 0 : index
    %1 = vector.load %arg10[%c0_1, %c0_2] : memref<64x32xf32, #tpu.memory_space<vmem>>, vector<64x32xf32>
    %c0_3 = arith.constant 0 : index
    %c0_4 = arith.constant 0 : index
    %2 = vector.load %arg11[%c0_3, %c0_4] : memref<64x64xf32, #tpu.memory_space<vmem>>, vector<64x64xf32>
    %c0_5 = arith.constant 0 : index
    %c0_6 = arith.constant 0 : index
    %3 = vector.load %arg12[%c0_5, %c0_6] : memref<16x64xf32, #tpu.memory_space<vmem>>, vector<16x64xf32>
    %c0_7 = arith.constant 0 : index
    %c0_8 = arith.constant 0 : index
    %4 = vector.load %arg1[%c0_7, %c0_8] : memref<64x32xf32, #tpu.memory_space<vmem>>, vector<32x32xf32>
    %c32 = arith.constant 32 : index
    %c0_9 = arith.constant 0 : index
    %5 = vector.load %arg1[%c32, %c0_9] : memref<64x32xf32, #tpu.memory_space<vmem>>, vector<32x32xf32>
    %cst = arith.constant dense<0.000000e+00> : vector<16x32xf32>
    %6 = tpu.matmul %0, %4, %cst {dimension_numbers = #tpu.dot_dimension_numbers<[1], [0], [0], [1], [0, 0, 1, 1], [], []>} : vector<16x32xf32>, vector<32x32xf32>, vector<16x32xf32> -> vector<16x32xf32>
    %c0_10 = arith.constant 0 : index
    %c0_11 = arith.constant 0 : index
    %c0_12 = arith.constant 0 : index
    %7 = vector.load %arg7[%c0_10, %c0_11, %c0_12] : memref<20x16x32xf32, #tpu.memory_space<vmem>>, vector<1x16x32xf32>
    %8 = vector.shape_cast %7 : vector<1x16x32xf32> to vector<16x32xf32>
    %9 = arith.addf %6, %8 : vector<16x32xf32>
    %cst_13 = arith.constant 0.000000e+00 : f32
    %10 = vector.broadcast %cst_13 : f32 to vector<16x32xf32>
    %11 = arith.maximumf %9, %10 : vector<16x32xf32>
    %cst_14 = arith.constant dense<0.000000e+00> : vector<16x32xf32>
    %12 = tpu.matmul %11, %5, %cst_14 {dimension_numbers = #tpu.dot_dimension_numbers<[1], [0], [0], [1], [0, 0, 1, 1], [], []>} : vector<16x32xf32>, vector<32x32xf32>, vector<16x32xf32> -> vector<16x32xf32>
    %c1 = arith.constant 1 : index
    %c0_15 = arith.constant 0 : index
    %c0_16 = arith.constant 0 : index
    %13 = vector.load %arg7[%c1, %c0_15, %c0_16] : memref<20x16x32xf32, #tpu.memory_space<vmem>>, vector<1x16x32xf32>
    %14 = vector.shape_cast %13 : vector<1x16x32xf32> to vector<16x32xf32>
    %15 = arith.addf %12, %14 : vector<16x32xf32>
    %cst_17 = arith.constant 0.000000e+00 : f32
    %16 = vector.broadcast %cst_17 : f32 to vector<16x32xf32>
    %17 = arith.maximumf %15, %16 : vector<16x32xf32>
    %c0_18 = arith.constant 0 : index
    %c0_19 = arith.constant 0 : index
    %c0_20 = arith.constant 0 : index
    %18 = vector.load %arg2[%c0_18, %c0_19, %c0_20] : memref<6x32x32xf32, #tpu.memory_space<vmem>>, vector<1x32x32xf32>
    %19 = vector.shape_cast %18 : vector<1x32x32xf32> to vector<32x32xf32>
    %cst_21 = arith.constant dense<0.000000e+00> : vector<16x32xf32>
    %20 = tpu.matmul %17, %19, %cst_21 {dimension_numbers = #tpu.dot_dimension_numbers<[1], [0], [0], [1], [0, 0, 1, 1], [], []>} : vector<16x32xf32>, vector<32x32xf32>, vector<16x32xf32> -> vector<16x32xf32>
    %c2 = arith.constant 2 : index
    %c0_22 = arith.constant 0 : index
    %c0_23 = arith.constant 0 : index
    %21 = vector.load %arg7[%c2, %c0_22, %c0_23] : memref<20x16x32xf32, #tpu.memory_space<vmem>>, vector<1x16x32xf32>
    %22 = vector.shape_cast %21 : vector<1x16x32xf32> to vector<16x32xf32>
    %23 = arith.addf %20, %22 : vector<16x32xf32>
    %c1_24 = arith.constant 1 : index
    %c0_25 = arith.constant 0 : index
    %c0_26 = arith.constant 0 : index
    %24 = vector.load %arg2[%c1_24, %c0_25, %c0_26] : memref<6x32x32xf32, #tpu.memory_space<vmem>>, vector<1x32x32xf32>
    %25 = vector.shape_cast %24 : vector<1x32x32xf32> to vector<32x32xf32>
    %cst_27 = arith.constant dense<0.000000e+00> : vector<16x32xf32>
    %26 = tpu.matmul %17, %25, %cst_27 {dimension_numbers = #tpu.dot_dimension_numbers<[1], [0], [0], [1], [0, 0, 1, 1], [], []>} : vector<16x32xf32>, vector<32x32xf32>, vector<16x32xf32> -> vector<16x32xf32>
    %c3 = arith.constant 3 : index
    %c0_28 = arith.constant 0 : index
    %c0_29 = arith.constant 0 : index
    %27 = vector.load %arg7[%c3, %c0_28, %c0_29] : memref<20x16x32xf32, #tpu.memory_space<vmem>>, vector<1x16x32xf32>
    %28 = vector.shape_cast %27 : vector<1x16x32xf32> to vector<16x32xf32>
    %29 = arith.addf %26, %28 : vector<16x32xf32>
    %c2_30 = arith.constant 2 : index
    %c0_31 = arith.constant 0 : index
    %c0_32 = arith.constant 0 : index
    %30 = vector.load %arg2[%c2_30, %c0_31, %c0_32] : memref<6x32x32xf32, #tpu.memory_space<vmem>>, vector<1x32x32xf32>
    %31 = vector.shape_cast %30 : vector<1x32x32xf32> to vector<32x32xf32>
    %cst_33 = arith.constant dense<0.000000e+00> : vector<16x32xf32>
    %32 = tpu.matmul %17, %31, %cst_33 {dimension_numbers = #tpu.dot_dimension_numbers<[1], [0], [0], [1], [0, 0, 1, 1], [], []>} : vector<16x32xf32>, vector<32x32xf32>, vector<16x32xf32> -> vector<16x32xf32>
    %c4 = arith.constant 4 : index
    %c0_34 = arith.constant 0 : index
    %c0_35 = arith.constant 0 : index
    %33 = vector.load %arg7[%c4, %c0_34, %c0_35] : memref<20x16x32xf32, #tpu.memory_space<vmem>>, vector<1x16x32xf32>
    %34 = vector.shape_cast %33 : vector<1x16x32xf32> to vector<16x32xf32>
    %35 = arith.addf %32, %34 : vector<16x32xf32>
    %36 = tpu.concatenate %29, %29, %29, %29 in 0 : vector<16x32xf32>, vector<16x32xf32>, vector<16x32xf32>, vector<16x32xf32> -> vector<64x32xf32>
    %37 = arith.mulf %36, %1 : vector<64x32xf32>
    %38 = tpu.concatenate %35, %35, %35, %35 in 0 : vector<16x32xf32>, vector<16x32xf32>, vector<16x32xf32>, vector<16x32xf32> -> vector<64x32xf32>
    %39 = arith.mulf %38, %1 : vector<64x32xf32>
    %cst_36 = arith.constant dense<0.000000e+00> : vector<16x64xf32>
    %40 = tpu.matmul %23, %37, %cst_36 {dimension_numbers = #tpu.dot_dimension_numbers<[1], [1], [0], [0], [0, 0, 1, 0], [], []>} : vector<16x32xf32>, vector<64x32xf32>, vector<16x64xf32> -> vector<16x64xf32>
    %41 = arith.addf %40, %3 : vector<16x64xf32>
    %cst_37 = arith.constant dense<0xFF800000> : vector<16xf32>
    %42 = vector.multi_reduction <maximumf>, %41, %cst_37 [1] : vector<16x64xf32> to vector<16xf32>
    %43 = vector.shape_cast %42 : vector<16xf32> to vector<16x1xf32>
    %44 = vector.broadcast %43 : vector<16x1xf32> to vector<16x64xf32>
    %45 = arith.subf %41, %44 : vector<16x64xf32>
    %46 = math.exp %45 : vector<16x64xf32>
    %cst_38 = arith.constant dense<0.000000e+00> : vector<16x64xf32>
    %47 = tpu.matmul %46, %2, %cst_38 {dimension_numbers = #tpu.dot_dimension_numbers<[1], [0], [0], [1], [0, 0, 1, 1], [], []>} : vector<16x64xf32>, vector<64x64xf32>, vector<16x64xf32> -> vector<16x64xf32>
    %cst_39 = arith.constant 9.99999968E-21 : f32
    %48 = vector.broadcast %cst_39 : f32 to vector<16x64xf32>
    %49 = arith.addf %47, %48 : vector<16x64xf32>
    %50 = tpu.reciprocal %49 {approx = true} : vector<16x64xf32> -> vector<16x64xf32>
    %51 = arith.mulf %46, %50 : vector<16x64xf32>
    %cst_40 = arith.constant dense<0.000000e+00> : vector<16x32xf32>
    %52 = tpu.matmul %51, %39, %cst_40 {dimension_numbers = #tpu.dot_dimension_numbers<[1], [0], [0], [1], [0, 0, 1, 1], [], []>} : vector<16x64xf32>, vector<64x32xf32>, vector<16x32xf32> -> vector<16x32xf32>
    %c0_41 = arith.constant 0 : index
    %c0_42 = arith.constant 0 : index
    %c0_43 = arith.constant 0 : index
    %53 = vector.load %arg3[%c0_41, %c0_42, %c0_43] : memref<2x32x32xf32, #tpu.memory_space<vmem>>, vector<1x32x32xf32>
    %54 = vector.shape_cast %53 : vector<1x32x32xf32> to vector<32x32xf32>
    %cst_44 = arith.constant dense<0.000000e+00> : vector<16x32xf32>
    %55 = tpu.matmul %52, %54, %cst_44 {dimension_numbers = #tpu.dot_dimension_numbers<[1], [0], [0], [1], [0, 0, 1, 1], [], []>} : vector<16x32xf32>, vector<32x32xf32>, vector<16x32xf32> -> vector<16x32xf32>
    %c5 = arith.constant 5 : index
    %c0_45 = arith.constant 0 : index
    %c0_46 = arith.constant 0 : index
    %56 = vector.load %arg7[%c5, %c0_45, %c0_46] : memref<20x16x32xf32, #tpu.memory_space<vmem>>, vector<1x16x32xf32>
    %57 = vector.shape_cast %56 : vector<1x16x32xf32> to vector<16x32xf32>
    %58 = arith.addf %55, %57 : vector<16x32xf32>
    %59 = arith.addf %17, %58 : vector<16x32xf32>
    %c6 = arith.constant 6 : index
    %c0_47 = arith.constant 0 : index
    %c0_48 = arith.constant 0 : index
    %60 = vector.load %arg7[%c6, %c0_47, %c0_48] : memref<20x16x32xf32, #tpu.memory_space<vmem>>, vector<1x16x32xf32>
    %61 = vector.shape_cast %60 : vector<1x16x32xf32> to vector<16x32xf32>
    %c7 = arith.constant 7 : index
    %c0_49 = arith.constant 0 : index
    %c0_50 = arith.constant 0 : index
    %62 = vector.load %arg7[%c7, %c0_49, %c0_50] : memref<20x16x32xf32, #tpu.memory_space<vmem>>, vector<1x16x32xf32>
    %63 = vector.shape_cast %62 : vector<1x16x32xf32> to vector<16x32xf32>
    %cst_51 = arith.constant dense<0.000000e+00> : vector<16xf32>
    %64 = vector.multi_reduction <add>, %59, %cst_51 [1] : vector<16x32xf32> to vector<16xf32>
    %65 = vector.shape_cast %64 : vector<16xf32> to vector<16x1xf32>
    %cst_52 = arith.constant 3.200000e+01 : f32
    %66 = vector.broadcast %cst_52 : f32 to vector<16x1xf32>
    %67 = arith.divf %65, %66 : vector<16x1xf32>
    %68 = vector.broadcast %67 : vector<16x1xf32> to vector<16x32xf32>
    %69 = arith.subf %59, %68 : vector<16x32xf32>
    %70 = arith.mulf %69, %69 : vector<16x32xf32>
    %cst_53 = arith.constant dense<0.000000e+00> : vector<16xf32>
    %71 = vector.multi_reduction <add>, %70, %cst_53 [1] : vector<16x32xf32> to vector<16xf32>
    %72 = vector.shape_cast %71 : vector<16xf32> to vector<16x1xf32>
    %cst_54 = arith.constant 3.200000e+01 : f32
    %73 = vector.broadcast %cst_54 : f32 to vector<16x1xf32>
    %74 = arith.divf %72, %73 : vector<16x1xf32>
    %75 = vector.broadcast %67 : vector<16x1xf32> to vector<16x32xf32>
    %76 = arith.subf %59, %75 : vector<16x32xf32>
    %cst_55 = arith.constant 9.99999974E-6 : f32
    %77 = vector.broadcast %cst_55 : f32 to vector<16x1xf32>
    %78 = arith.addf %74, %77 : vector<16x1xf32>
    %79 = math.rsqrt %78 : vector<16x1xf32>
    %80 = vector.broadcast %79 : vector<16x1xf32> to vector<16x32xf32>
    %81 = arith.mulf %76, %80 : vector<16x32xf32>
    %82 = arith.mulf %81, %61 : vector<16x32xf32>
    %83 = arith.addf %82, %63 : vector<16x32xf32>
    %c0_56 = arith.constant 0 : index
    %c0_57 = arith.constant 0 : index
    %c0_58 = arith.constant 0 : index
    %84 = vector.load %arg4[%c0_56, %c0_57, %c0_58] : memref<2x32x64xf32, #tpu.memory_space<vmem>>, vector<1x32x64xf32>
    %85 = vector.shape_cast %84 : vector<1x32x64xf32> to vector<32x64xf32>
    %cst_59 = arith.constant dense<0.000000e+00> : vector<16x64xf32>
    %86 = tpu.matmul %83, %85, %cst_59 {dimension_numbers = #tpu.dot_dimension_numbers<[1], [0], [0], [1], [0, 0, 1, 1], [], []>} : vector<16x32xf32>, vector<32x64xf32>, vector<16x64xf32> -> vector<16x64xf32>
    %c0_60 = arith.constant 0 : index
    %c0_61 = arith.constant 0 : index
    %c0_62 = arith.constant 0 : index
    %87 = vector.load %arg8[%c0_60, %c0_61, %c0_62] : memref<2x16x64xf32, #tpu.memory_space<vmem>>, vector<1x16x64xf32>
    %88 = vector.shape_cast %87 : vector<1x16x64xf32> to vector<16x64xf32>
    %89 = arith.addf %86, %88 : vector<16x64xf32>
    %cst_63 = arith.constant 0.000000e+00 : f32
    %90 = vector.broadcast %cst_63 : f32 to vector<16x64xf32>
    %91 = arith.maximumf %89, %90 : vector<16x64xf32>
    %c0_64 = arith.constant 0 : index
    %c0_65 = arith.constant 0 : index
    %c0_66 = arith.constant 0 : index
    %92 = vector.load %arg5[%c0_64, %c0_65, %c0_66] : memref<2x64x32xf32, #tpu.memory_space<vmem>>, vector<1x64x32xf32>
    %93 = vector.shape_cast %92 : vector<1x64x32xf32> to vector<64x32xf32>
    %cst_67 = arith.constant dense<0.000000e+00> : vector<16x32xf32>
    %94 = tpu.matmul %91, %93, %cst_67 {dimension_numbers = #tpu.dot_dimension_numbers<[1], [0], [0], [1], [0, 0, 1, 1], [], []>} : vector<16x64xf32>, vector<64x32xf32>, vector<16x32xf32> -> vector<16x32xf32>
    %c10 = arith.constant 10 : index
    %c0_68 = arith.constant 0 : index
    %c0_69 = arith.constant 0 : index
    %95 = vector.load %arg7[%c10, %c0_68, %c0_69] : memref<20x16x32xf32, #tpu.memory_space<vmem>>, vector<1x16x32xf32>
    %96 = vector.shape_cast %95 : vector<1x16x32xf32> to vector<16x32xf32>
    %97 = arith.addf %94, %96 : vector<16x32xf32>
    %98 = arith.addf %83, %97 : vector<16x32xf32>
    %c8 = arith.constant 8 : index
    %c0_70 = arith.constant 0 : index
    %c0_71 = arith.constant 0 : index
    %99 = vector.load %arg7[%c8, %c0_70, %c0_71] : memref<20x16x32xf32, #tpu.memory_space<vmem>>, vector<1x16x32xf32>
    %100 = vector.shape_cast %99 : vector<1x16x32xf32> to vector<16x32xf32>
    %c9 = arith.constant 9 : index
    %c0_72 = arith.constant 0 : index
    %c0_73 = arith.constant 0 : index
    %101 = vector.load %arg7[%c9, %c0_72, %c0_73] : memref<20x16x32xf32, #tpu.memory_space<vmem>>, vector<1x16x32xf32>
    %102 = vector.shape_cast %101 : vector<1x16x32xf32> to vector<16x32xf32>
    %cst_74 = arith.constant dense<0.000000e+00> : vector<16xf32>
    %103 = vector.multi_reduction <add>, %98, %cst_74 [1] : vector<16x32xf32> to vector<16xf32>
    %104 = vector.shape_cast %103 : vector<16xf32> to vector<16x1xf32>
    %cst_75 = arith.constant 3.200000e+01 : f32
    %105 = vector.broadcast %cst_75 : f32 to vector<16x1xf32>
    %106 = arith.divf %104, %105 : vector<16x1xf32>
    %107 = vector.broadcast %106 : vector<16x1xf32> to vector<16x32xf32>
    %108 = arith.subf %98, %107 : vector<16x32xf32>
    %109 = arith.mulf %108, %108 : vector<16x32xf32>
    %cst_76 = arith.constant dense<0.000000e+00> : vector<16xf32>
    %110 = vector.multi_reduction <add>, %109, %cst_76 [1] : vector<16x32xf32> to vector<16xf32>
    %111 = vector.shape_cast %110 : vector<16xf32> to vector<16x1xf32>
    %cst_77 = arith.constant 3.200000e+01 : f32
    %112 = vector.broadcast %cst_77 : f32 to vector<16x1xf32>
    %113 = arith.divf %111, %112 : vector<16x1xf32>
    %114 = vector.broadcast %106 : vector<16x1xf32> to vector<16x32xf32>
    %115 = arith.subf %98, %114 : vector<16x32xf32>
    %cst_78 = arith.constant 9.99999974E-6 : f32
    %116 = vector.broadcast %cst_78 : f32 to vector<16x1xf32>
    %117 = arith.addf %113, %116 : vector<16x1xf32>
    %118 = math.rsqrt %117 : vector<16x1xf32>
    %119 = vector.broadcast %118 : vector<16x1xf32> to vector<16x32xf32>
    %120 = arith.mulf %115, %119 : vector<16x32xf32>
    %121 = arith.mulf %120, %100 : vector<16x32xf32>
    %122 = arith.addf %121, %102 : vector<16x32xf32>
    %c3_79 = arith.constant 3 : index
    %c0_80 = arith.constant 0 : index
    %c0_81 = arith.constant 0 : index
    %123 = vector.load %arg2[%c3_79, %c0_80, %c0_81] : memref<6x32x32xf32, #tpu.memory_space<vmem>>, vector<1x32x32xf32>
    %124 = vector.shape_cast %123 : vector<1x32x32xf32> to vector<32x32xf32>
    %cst_82 = arith.constant dense<0.000000e+00> : vector<16x32xf32>
    %125 = tpu.matmul %122, %124, %cst_82 {dimension_numbers = #tpu.dot_dimension_numbers<[1], [0], [0], [1], [0, 0, 1, 1], [], []>} : vector<16x32xf32>, vector<32x32xf32>, vector<16x32xf32> -> vector<16x32xf32>
    %c11 = arith.constant 11 : index
    %c0_83 = arith.constant 0 : index
    %c0_84 = arith.constant 0 : index
    %126 = vector.load %arg7[%c11, %c0_83, %c0_84] : memref<20x16x32xf32, #tpu.memory_space<vmem>>, vector<1x16x32xf32>
    %127 = vector.shape_cast %126 : vector<1x16x32xf32> to vector<16x32xf32>
    %128 = arith.addf %125, %127 : vector<16x32xf32>
    %c4_85 = arith.constant 4 : index
    %c0_86 = arith.constant 0 : index
    %c0_87 = arith.constant 0 : index
    %129 = vector.load %arg2[%c4_85, %c0_86, %c0_87] : memref<6x32x32xf32, #tpu.memory_space<vmem>>, vector<1x32x32xf32>
    %130 = vector.shape_cast %129 : vector<1x32x32xf32> to vector<32x32xf32>
    %cst_88 = arith.constant dense<0.000000e+00> : vector<16x32xf32>
    %131 = tpu.matmul %122, %130, %cst_88 {dimension_numbers = #tpu.dot_dimension_numbers<[1], [0], [0], [1], [0, 0, 1, 1], [], []>} : vector<16x32xf32>, vector<32x32xf32>, vector<16x32xf32> -> vector<16x32xf32>
    %c12 = arith.constant 12 : index
    %c0_89 = arith.constant 0 : index
    %c0_90 = arith.constant 0 : index
    %132 = vector.load %arg7[%c12, %c0_89, %c0_90] : memref<20x16x32xf32, #tpu.memory_space<vmem>>, vector<1x16x32xf32>
    %133 = vector.shape_cast %132 : vector<1x16x32xf32> to vector<16x32xf32>
    %134 = arith.addf %131, %133 : vector<16x32xf32>
    %c5_91 = arith.constant 5 : index
    %c0_92 = arith.constant 0 : index
    %c0_93 = arith.constant 0 : index
    %135 = vector.load %arg2[%c5_91, %c0_92, %c0_93] : memref<6x32x32xf32, #tpu.memory_space<vmem>>, vector<1x32x32xf32>
    %136 = vector.shape_cast %135 : vector<1x32x32xf32> to vector<32x32xf32>
    %cst_94 = arith.constant dense<0.000000e+00> : vector<16x32xf32>
    %137 = tpu.matmul %122, %136, %cst_94 {dimension_numbers = #tpu.dot_dimension_numbers<[1], [0], [0], [1], [0, 0, 1, 1], [], []>} : vector<16x32xf32>, vector<32x32xf32>, vector<16x32xf32> -> vector<16x32xf32>
    %c13 = arith.constant 13 : index
    %c0_95 = arith.constant 0 : index
    %c0_96 = arith.constant 0 : index
    %138 = vector.load %arg7[%c13, %c0_95, %c0_96] : memref<20x16x32xf32, #tpu.memory_space<vmem>>, vector<1x16x32xf32>
    %139 = vector.shape_cast %138 : vector<1x16x32xf32> to vector<16x32xf32>
    %140 = arith.addf %137, %139 : vector<16x32xf32>
    %141 = tpu.concatenate %134, %134, %134, %134 in 0 : vector<16x32xf32>, vector<16x32xf32>, vector<16x32xf32>, vector<16x32xf32> -> vector<64x32xf32>
    %142 = arith.mulf %141, %1 : vector<64x32xf32>
    %143 = tpu.concatenate %140, %140, %140, %140 in 0 : vector<16x32xf32>, vector<16x32xf32>, vector<16x32xf32>, vector<16x32xf32> -> vector<64x32xf32>
    %144 = arith.mulf %143, %1 : vector<64x32xf32>
    %cst_97 = arith.constant dense<0.000000e+00> : vector<16x64xf32>
    %145 = tpu.matmul %128, %142, %cst_97 {dimension_numbers = #tpu.dot_dimension_numbers<[1], [1], [0], [0], [0, 0, 1, 0], [], []>} : vector<16x32xf32>, vector<64x32xf32>, vector<16x64xf32> -> vector<16x64xf32>
    %146 = arith.addf %145, %3 : vector<16x64xf32>
    %cst_98 = arith.constant dense<0xFF800000> : vector<16xf32>
    %147 = vector.multi_reduction <maximumf>, %146, %cst_98 [1] : vector<16x64xf32> to vector<16xf32>
    %148 = vector.shape_cast %147 : vector<16xf32> to vector<16x1xf32>
    %149 = vector.broadcast %148 : vector<16x1xf32> to vector<16x64xf32>
    %150 = arith.subf %146, %149 : vector<16x64xf32>
    %151 = math.exp %150 : vector<16x64xf32>
    %cst_99 = arith.constant dense<0.000000e+00> : vector<16x64xf32>
    %152 = tpu.matmul %151, %2, %cst_99 {dimension_numbers = #tpu.dot_dimension_numbers<[1], [0], [0], [1], [0, 0, 1, 1], [], []>} : vector<16x64xf32>, vector<64x64xf32>, vector<16x64xf32> -> vector<16x64xf32>
    %cst_100 = arith.constant 9.99999968E-21 : f32
    %153 = vector.broadcast %cst_100 : f32 to vector<16x64xf32>
    %154 = arith.addf %152, %153 : vector<16x64xf32>
    %155 = tpu.reciprocal %154 {approx = true} : vector<16x64xf32> -> vector<16x64xf32>
    %156 = arith.mulf %151, %155 : vector<16x64xf32>
    %cst_101 = arith.constant dense<0.000000e+00> : vector<16x32xf32>
    %157 = tpu.matmul %156, %144, %cst_101 {dimension_numbers = #tpu.dot_dimension_numbers<[1], [0], [0], [1], [0, 0, 1, 1], [], []>} : vector<16x64xf32>, vector<64x32xf32>, vector<16x32xf32> -> vector<16x32xf32>
    %c1_102 = arith.constant 1 : index
    %c0_103 = arith.constant 0 : index
    %c0_104 = arith.constant 0 : index
    %158 = vector.load %arg3[%c1_102, %c0_103, %c0_104] : memref<2x32x32xf32, #tpu.memory_space<vmem>>, vector<1x32x32xf32>
    %159 = vector.shape_cast %158 : vector<1x32x32xf32> to vector<32x32xf32>
    %cst_105 = arith.constant dense<0.000000e+00> : vector<16x32xf32>
    %160 = tpu.matmul %157, %159, %cst_105 {dimension_numbers = #tpu.dot_dimension_numbers<[1], [0], [0], [1], [0, 0, 1, 1], [], []>} : vector<16x32xf32>, vector<32x32xf32>, vector<16x32xf32> -> vector<16x32xf32>
    %c14 = arith.constant 14 : index
    %c0_106 = arith.constant 0 : index
    %c0_107 = arith.constant 0 : index
    %161 = vector.load %arg7[%c14, %c0_106, %c0_107] : memref<20x16x32xf32, #tpu.memory_space<vmem>>, vector<1x16x32xf32>
    %162 = vector.shape_cast %161 : vector<1x16x32xf32> to vector<16x32xf32>
    %163 = arith.addf %160, %162 : vector<16x32xf32>
    %164 = arith.addf %122, %163 : vector<16x32xf32>
    %c15 = arith.constant 15 : index
    %c0_108 = arith.constant 0 : index
    %c0_109 = arith.constant 0 : index
    %165 = vector.load %arg7[%c15, %c0_108, %c0_109] : memref<20x16x32xf32, #tpu.memory_space<vmem>>, vector<1x16x32xf32>
    %166 = vector.shape_cast %165 : vector<1x16x32xf32> to vector<16x32xf32>
    %c16 = arith.constant 16 : index
    %c0_110 = arith.constant 0 : index
    %c0_111 = arith.constant 0 : index
    %167 = vector.load %arg7[%c16, %c0_110, %c0_111] : memref<20x16x32xf32, #tpu.memory_space<vmem>>, vector<1x16x32xf32>
    %168 = vector.shape_cast %167 : vector<1x16x32xf32> to vector<16x32xf32>
    %cst_112 = arith.constant dense<0.000000e+00> : vector<16xf32>
    %169 = vector.multi_reduction <add>, %164, %cst_112 [1] : vector<16x32xf32> to vector<16xf32>
    %170 = vector.shape_cast %169 : vector<16xf32> to vector<16x1xf32>
    %cst_113 = arith.constant 3.200000e+01 : f32
    %171 = vector.broadcast %cst_113 : f32 to vector<16x1xf32>
    %172 = arith.divf %170, %171 : vector<16x1xf32>
    %173 = vector.broadcast %172 : vector<16x1xf32> to vector<16x32xf32>
    %174 = arith.subf %164, %173 : vector<16x32xf32>
    %175 = arith.mulf %174, %174 : vector<16x32xf32>
    %cst_114 = arith.constant dense<0.000000e+00> : vector<16xf32>
    %176 = vector.multi_reduction <add>, %175, %cst_114 [1] : vector<16x32xf32> to vector<16xf32>
    %177 = vector.shape_cast %176 : vector<16xf32> to vector<16x1xf32>
    %cst_115 = arith.constant 3.200000e+01 : f32
    %178 = vector.broadcast %cst_115 : f32 to vector<16x1xf32>
    %179 = arith.divf %177, %178 : vector<16x1xf32>
    %180 = vector.broadcast %172 : vector<16x1xf32> to vector<16x32xf32>
    %181 = arith.subf %164, %180 : vector<16x32xf32>
    %cst_116 = arith.constant 9.99999974E-6 : f32
    %182 = vector.broadcast %cst_116 : f32 to vector<16x1xf32>
    %183 = arith.addf %179, %182 : vector<16x1xf32>
    %184 = math.rsqrt %183 : vector<16x1xf32>
    %185 = vector.broadcast %184 : vector<16x1xf32> to vector<16x32xf32>
    %186 = arith.mulf %181, %185 : vector<16x32xf32>
    %187 = arith.mulf %186, %166 : vector<16x32xf32>
    %188 = arith.addf %187, %168 : vector<16x32xf32>
    %c1_117 = arith.constant 1 : index
    %c0_118 = arith.constant 0 : index
    %c0_119 = arith.constant 0 : index
    %189 = vector.load %arg4[%c1_117, %c0_118, %c0_119] : memref<2x32x64xf32, #tpu.memory_space<vmem>>, vector<1x32x64xf32>
    %190 = vector.shape_cast %189 : vector<1x32x64xf32> to vector<32x64xf32>
    %cst_120 = arith.constant dense<0.000000e+00> : vector<16x64xf32>
    %191 = tpu.matmul %188, %190, %cst_120 {dimension_numbers = #tpu.dot_dimension_numbers<[1], [0], [0], [1], [0, 0, 1, 1], [], []>} : vector<16x32xf32>, vector<32x64xf32>, vector<16x64xf32> -> vector<16x64xf32>
    %c1_121 = arith.constant 1 : index
    %c0_122 = arith.constant 0 : index
    %c0_123 = arith.constant 0 : index
    %192 = vector.load %arg8[%c1_121, %c0_122, %c0_123] : memref<2x16x64xf32, #tpu.memory_space<vmem>>, vector<1x16x64xf32>
    %193 = vector.shape_cast %192 : vector<1x16x64xf32> to vector<16x64xf32>
    %194 = arith.addf %191, %193 : vector<16x64xf32>
    %cst_124 = arith.constant 0.000000e+00 : f32
    %195 = vector.broadcast %cst_124 : f32 to vector<16x64xf32>
    %196 = arith.maximumf %194, %195 : vector<16x64xf32>
    %c1_125 = arith.constant 1 : index
    %c0_126 = arith.constant 0 : index
    %c0_127 = arith.constant 0 : index
    %197 = vector.load %arg5[%c1_125, %c0_126, %c0_127] : memref<2x64x32xf32, #tpu.memory_space<vmem>>, vector<1x64x32xf32>
    %198 = vector.shape_cast %197 : vector<1x64x32xf32> to vector<64x32xf32>
    %cst_128 = arith.constant dense<0.000000e+00> : vector<16x32xf32>
    %199 = tpu.matmul %196, %198, %cst_128 {dimension_numbers = #tpu.dot_dimension_numbers<[1], [0], [0], [1], [0, 0, 1, 1], [], []>} : vector<16x64xf32>, vector<64x32xf32>, vector<16x32xf32> -> vector<16x32xf32>
    %c19 = arith.constant 19 : index
    %c0_129 = arith.constant 0 : index
    %c0_130 = arith.constant 0 : index
    %200 = vector.load %arg7[%c19, %c0_129, %c0_130] : memref<20x16x32xf32, #tpu.memory_space<vmem>>, vector<1x16x32xf32>
    %201 = vector.shape_cast %200 : vector<1x16x32xf32> to vector<16x32xf32>
    %202 = arith.addf %199, %201 : vector<16x32xf32>
    %203 = arith.addf %188, %202 : vector<16x32xf32>
    %c17 = arith.constant 17 : index
    %c0_131 = arith.constant 0 : index
    %c0_132 = arith.constant 0 : index
    %204 = vector.load %arg7[%c17, %c0_131, %c0_132] : memref<20x16x32xf32, #tpu.memory_space<vmem>>, vector<1x16x32xf32>
    %205 = vector.shape_cast %204 : vector<1x16x32xf32> to vector<16x32xf32>
    %c18 = arith.constant 18 : index
    %c0_133 = arith.constant 0 : index
    %c0_134 = arith.constant 0 : index
    %206 = vector.load %arg7[%c18, %c0_133, %c0_134] : memref<20x16x32xf32, #tpu.memory_space<vmem>>, vector<1x16x32xf32>
    %207 = vector.shape_cast %206 : vector<1x16x32xf32> to vector<16x32xf32>
    %cst_135 = arith.constant dense<0.000000e+00> : vector<16xf32>
    %208 = vector.multi_reduction <add>, %203, %cst_135 [1] : vector<16x32xf32> to vector<16xf32>
    %209 = vector.shape_cast %208 : vector<16xf32> to vector<16x1xf32>
    %cst_136 = arith.constant 3.200000e+01 : f32
    %210 = vector.broadcast %cst_136 : f32 to vector<16x1xf32>
    %211 = arith.divf %209, %210 : vector<16x1xf32>
    %212 = vector.broadcast %211 : vector<16x1xf32> to vector<16x32xf32>
    %213 = arith.subf %203, %212 : vector<16x32xf32>
    %214 = arith.mulf %213, %213 : vector<16x32xf32>
    %cst_137 = arith.constant dense<0.000000e+00> : vector<16xf32>
    %215 = vector.multi_reduction <add>, %214, %cst_137 [1] : vector<16x32xf32> to vector<16xf32>
    %216 = vector.shape_cast %215 : vector<16xf32> to vector<16x1xf32>
    %cst_138 = arith.constant 3.200000e+01 : f32
    %217 = vector.broadcast %cst_138 : f32 to vector<16x1xf32>
    %218 = arith.divf %216, %217 : vector<16x1xf32>
    %219 = vector.broadcast %211 : vector<16x1xf32> to vector<16x32xf32>
    %220 = arith.subf %203, %219 : vector<16x32xf32>
    %cst_139 = arith.constant 9.99999974E-6 : f32
    %221 = vector.broadcast %cst_139 : f32 to vector<16x1xf32>
    %222 = arith.addf %218, %221 : vector<16x1xf32>
    %223 = math.rsqrt %222 : vector<16x1xf32>
    %224 = vector.broadcast %223 : vector<16x1xf32> to vector<16x32xf32>
    %225 = arith.mulf %220, %224 : vector<16x32xf32>
    %226 = arith.mulf %225, %205 : vector<16x32xf32>
    %227 = arith.addf %226, %207 : vector<16x32xf32>
    %c0_140 = arith.constant 0 : index
    %c0_141 = arith.constant 0 : index
    %228 = vector.load %arg6[%c0_140, %c0_141] : memref<32x128xf32, #tpu.memory_space<vmem>>, vector<32x128xf32>
    %cst_142 = arith.constant dense<0.000000e+00> : vector<16x128xf32>
    %229 = tpu.matmul %227, %228, %cst_142 {dimension_numbers = #tpu.dot_dimension_numbers<[1], [0], [0], [1], [0, 0, 1, 1], [], []>} : vector<16x32xf32>, vector<32x128xf32>, vector<16x128xf32> -> vector<16x128xf32>
    %c0_143 = arith.constant 0 : index
    %c0_144 = arith.constant 0 : index
    %230 = vector.load %arg9[%c0_143, %c0_144] : memref<16x128xf32, #tpu.memory_space<vmem>>, vector<16x128xf32>
    %231 = arith.addf %229, %230 : vector<16x128xf32>
    %232 = tpu.iota {dimensions = array<i32: 1>} : vector<16x128xi32>
    %c4_i32 = arith.constant 4 : i32
    %233 = vector.broadcast %c4_i32 : i32 to vector<16x128xi32>
    %234 = arith.cmpi slt, %232, %233 : vector<16x128xi32>
    %235 = arith.mulf %231, %231 : vector<16x128xf32>
    %cst_145 = arith.constant 0.000000e+00 : f32
    %236 = vector.broadcast %cst_145 : f32 to vector<16x128xf32>
    %237 = arith.select %234, %235, %236 : vector<16x128xi1>, vector<16x128xf32>
    %cst_146 = arith.constant dense<0.000000e+00> : vector<16xf32>
    %238 = vector.multi_reduction <add>, %237, %cst_146 [1] : vector<16x128xf32> to vector<16xf32>
    %239 = vector.shape_cast %238 : vector<16xf32> to vector<16x1xf32>
    %cst_147 = arith.constant 9.99999996E-13 : f32
    %240 = vector.broadcast %cst_147 : f32 to vector<16x1xf32>
    %241 = arith.addf %239, %240 : vector<16x1xf32>
    %242 = math.rsqrt %241 : vector<16x1xf32>
    %243 = vector.broadcast %242 : vector<16x1xf32> to vector<16x128xf32>
    %244 = arith.mulf %231, %243 : vector<16x128xf32>
    %245 = arith.select %234, %244, %231 : vector<16x128xi1>, vector<16x128xf32>
    %c0_148 = arith.constant 0 : index
    %c0_149 = arith.constant 0 : index
    %246 = vector.load %arg13[%c0_148, %c0_149] : memref<16x128xf32, #tpu.memory_space<vmem>>, vector<16x128xf32>
    tpu.vector_store %arg13[%c0_148, %c0_149], %245 {strides = array<i32>} : memref<16x128xf32, #tpu.memory_space<vmem>>, vector<16x128xf32>,
    return
  }
}

</mosaic_0001>

<llo_original>
// kernel: rotation_head_forward.1
$region0: #{rotation_head_forward.1}
  #allocation0 [shape = 'u32[]', space=smem, size = 0x4, offset = 0x4, fixed_abs, tag = 'smem constant byte address 0x4 - core index']
  #allocation1 [shape = 'u32[144,128]{1,0:T(1,128)}', space=vmem, size = 0x12000, scoped, tag = 'internal scratch']
  %s0 = inlined_call_operand.hbm [shape: f32[16,32], index: 0, kind: input, shape index: {}]
  %s1 = inlined_call_operand.vmem [shape: f32[64,32], index: 1, kind: input, shape index: {}]
  %s2 = inlined_call_operand.hbm [shape: f32[6,32,32], index: 2, kind: input, shape index: {}]
  %s3 = inlined_call_operand.hbm [shape: f32[2,32,32], index: 3, kind: input, shape index: {}]
  %s4 = inlined_call_operand.hbm [shape: f32[2,32,64], index: 4, kind: input, shape index: {}]
  %s5 = inlined_call_operand.vmem [shape: f32[2,64,32], index: 5, kind: input, shape index: {}]
  %s6 = inlined_call_operand.hbm [shape: f32[32,128], index: 6, kind: input, shape index: {}]
  %s7 = inlined_call_operand.vmem [shape: f32[20,16,32], index: 7, kind: input, shape index: {}]
  %s8 = inlined_call_operand.hbm [shape: f32[2,16,64], index: 8, kind: input, shape index: {}]
  %s9 = inlined_call_operand.hbm [shape: f32[16,128], index: 9, kind: input, shape index: {}]
  %s10 = inlined_call_operand.vmem [shape: f32[64,32], index: 10, kind: input, shape index: {}]
  %s11 = inlined_call_operand.hbm [shape: f32[64,64], index: 11, kind: input, shape index: {}]
  %s12 = inlined_call_operand.hbm [shape: f32[16,64], index: 12, kind: input, shape index: {}]
  %s13 = inlined_call_operand.vmem [shape: f32[16,128], index: 13, kind: output, shape index: {}]
  %s14 = sld [smem:[#allocation0]]
  $region98: #{rotation_head_forward.1} parent=0
    _
  %s16 = ssub.s32 1, %s14
  %s17 = scalar_select 0, %s16, %s14
  $region1: #{rotation_head_forward.1} parent=0
    #allocation2 [shape = 'u8[8192]{0}', space=vmem, size = 0x2000, scoped, tag = 'input window, operand 0, single buffered']
    #allocation3 [shape = 's32[1]{0}', space=sflag, size = 0x4, scoped, tag = 'scoped memory for rotation_head_forward.1']
    #allocation4 [shape = 'u8[98304]{0}', space=vmem, size = 0x18000, scoped, tag = 'input window, operand 2, single buffered']
    #allocation5 [shape = 's32[1]{0}', space=sflag, size = 0x4, scoped, tag = 'scoped memory for rotation_head_forward.1']
    #allocation6 [shape = 'u8[32768]{0}', space=vmem, size = 0x8000, scoped, tag = 'input window, operand 3, single buffered']
    #allocation7 [shape = 'u8[32768]{0}', space=vmem, size = 0x8000, scoped, tag = 'input window, operand 4, single buffered']
    #allocation8 [shape = 's32[1]{0}', space=sflag, size = 0x4, scoped, tag = 'scoped memory for rotation_head_forward.1']
    #allocation9 [shape = 'u8[16384]{0}', space=vmem, size = 0x4000, scoped, tag = 'input window, operand 6, single buffered']
    #allocation10 [shape = 'u8[16384]{0}', space=vmem, size = 0x4000, scoped, tag = 'input window, operand 8, single buffered']
    #allocation11 [shape = 's32[1]{0}', space=sflag, size = 0x4, scoped, tag = 'scoped memory for rotation_head_forward.1']
    #allocation12 [shape = 'u8[8192]{0}', space=vmem, size = 0x2000, scoped, tag = 'input window, operand 9, single buffered']
    #allocation13 [shape = 'u8[32768]{0}', space=vmem, size = 0x8000, scoped, tag = 'input window, operand 11, single buffered']
    #allocation14 [shape = 's32[1]{0}', space=sflag, size = 0x4, scoped, tag = 'scoped memory for rotation_head_forward.1']
    #allocation15 [shape = 'u8[8192]{0}', space=vmem, size = 0x2000, scoped, tag = 'input window, operand 12, single buffered']
    %18 = vsyncpa [#allocation3], 0
    %19 = vsyncpa [#allocation5], 0
    %20 = vsyncpa [#allocation8], 0
    %21 = vsyncpa [#allocation11], 0
    %22 = vsyncpa [#allocation14], 0
    // Predicated region
    $region2: #{rotation_head_forward.1} parent=1 // pred_check
      _
    $region3: #{rotation_head_forward.1} parent=1 // pred_check_branch
      %24 = sbr.rel (0) target = $region5
    $region4: #{rotation_head_forward.1} parent=1 // pred_region
      %s26 = ssub.s32 256, 256
      %27 = vsyncadd [#allocation3], %s26
      %s28 = sshll.u32 [#allocation2], 4
      %s29 = int_to_ptr.vmem [resolvable:$true] %s28
      %34 = dma.hbm_to_vmem [thread:$0]  %s0, 256, %s29, [#allocation3], 128, 128, 8
    $region5: #{rotation_head_forward.1} parent=1 // pred_fallthru
      _
    // Predicated region
    $region6: #{rotation_head_forward.1} parent=1 // pred_check
      _
    $region7: #{rotation_head_forward.1} parent=1 // pred_check_branch
      %36 = sbr.rel (0) target = $region9
    $region8: #{rotation_head_forward.1} parent=1 // pred_region
      _
    $region9: #{rotation_head_forward.1} parent=1 // pred_fallthru
      _
    // Predicated region
    $region10: #{rotation_head_forward.1} parent=1 // pred_check
      _
    $region11: #{rotation_head_forward.1} parent=1 // pred_check_branch
      %38 = sbr.rel (0) target = $region13
    $region12: #{rotation_head_forward.1} parent=1 // pred_region
      %s40 = ssub.s32 3072, 3072
      %41 = vsyncadd [#allocation5], %s40
      %s42 = sshll.u32 [#allocation4], 4
      %s43 = int_to_ptr.vmem [resolvable:$true] %s42
      %48 = dma.hbm_to_vmem [thread:$0]  %s2, 3072, %s43, [#allocation5], 128, 128, 8
    $region13: #{rotation_head_forward.1} parent=1 // pred_fallthru
      _
    // Predicated region
    $region14: #{rotation_head_forward.1} parent=1 // pred_check
      _
    $region15: #{rotation_head_forward.1} parent=1 // pred_check_branch
      %50 = sbr.rel (0) target = $region17
    $region16: #{rotation_head_forward.1} parent=1 // pred_region
      %s52 = ssub.s32 1024, 1024
      %53 = vsyncadd [#allocation5], %s52
      %s54 = sshll.u32 [#allocation6], 4
      %s55 = int_to_ptr.vmem [resolvable:$true] %s54
      %60 = dma.hbm_to_vmem [thread:$0]  %s3, 1024, %s55, [#allocation5], 128, 128, 8
    $region17: #{rotation_head_forward.1} parent=1 // pred_fallthru
      _
    // Predicated region
    $region18: #{rotation_head_forward.1} parent=1 // pred_check
      _
    $region19: #{rotation_head_forward.1} parent=1 // pred_check_branch
      %62 = sbr.rel (0) target = $region21
    $region20: #{rotation_head_forward.1} parent=1 // pred_region
      %s64 = ssub.s32 1024, 1024
      %65 = vsyncadd [#allocation8], %s64
      %s66 = sshll.u32 [#allocation7], 4
      %s67 = int_to_ptr.vmem [resolvable:$true] %s66
      %72 = dma.hbm_to_vmem [thread:$0]  %s4, 1024, %s67, [#allocation8], 128, 128, 8
    $region21: #{rotation_head_forward.1} parent=1 // pred_fallthru
      _
    // Predicated region
    $region22: #{rotation_head_forward.1} parent=1 // pred_check
      _
    $region23: #{rotation_head_forward.1} parent=1 // pred_check_branch
      %74 = sbr.rel (0) target = $region25
    $region24: #{rotation_head_forward.1} parent=1 // pred_region
      _
    $region25: #{rotation_head_forward.1} parent=1 // pred_fallthru
      _
    // Predicated region
    $region26: #{rotation_head_forward.1} parent=1 // pred_check
      _
    $region27: #{rotation_head_forward.1} parent=1 // pred_check_branch
      %76 = sbr.rel (0) target = $region29
    $region28: #{rotation_head_forward.1} parent=1 // pred_region
      %s78 = ssub.s32 512, 512
      %79 = vsyncadd [#allocation8], %s78
      %s80 = sshll.u32 [#allocation9], 4
      %s81 = int_to_ptr.vmem [resolvable:$true] %s80
      %86 = dma.hbm_to_vmem [thread:$0]  %s6, 512, %s81, [#allocation8], 128, 128, 8
    $region29: #{rotation_head_forward.1} parent=1 // pred_fallthru
      _
    // Predicated region
    $region30: #{rotation_head_forward.1} parent=1 // pred_check
      _
    $region31: #{rotation_head_forward.1} parent=1 // pred_check_branch
      %88 = sbr.rel (0) target = $region33
    $region32: #{rotation_head_forward.1} parent=1 // pred_region
      _
    $region33: #{rotation_head_forward.1} parent=1 // pred_fallthru
      _
    // Predicated region
    $region34: #{rotation_head_forward.1} parent=1 // pred_check
      _
    $region35: #{rotation_head_forward.1} parent=1 // pred_check_branch
      %90 = sbr.rel (0) target = $region37
    $region36: #{rotation_head_forward.1} parent=1 // pred_region
      %s92 = ssub.s32 512, 512
      %93 = vsyncadd [#allocation11], %s92
      %s94 = sshll.u32 [#allocation10], 4
      %s95 = int_to_ptr.vmem [resolvable:$true] %s94
      %100 = dma.hbm_to_vmem [thread:$0]  %s8, 512, %s95, [#allocation11], 128, 128, 8
    $region37: #{rotation_head_forward.1} parent=1 // pred_fallthru
      _
    // Predicated region
    $region38: #{rotation_head_forward.1} parent=1 // pred_check
      _
    $region39: #{rotation_head_forward.1} parent=1 // pred_check_branch
      %102 = sbr.rel (0) target = $region41
    $region40: #{rotation_head_forward.1} parent=1 // pred_region
      %s104 = ssub.s32 256, 256
      %105 = vsyncadd [#allocation11], %s104
      %s106 = sshll.u32 [#allocation12], 4
      %s107 = int_to_ptr.vmem [resolvable:$true] %s106
      %112 = dma.hbm_to_vmem [thread:$0]  %s9, 256, %s107, [#allocation11], 128, 128, 8
    $region41: #{rotation_head_forward.1} parent=1 // pred_fallthru
      _
    // Predicated region
    $region42: #{rotation_head_forward.1} parent=1 // pred_check
      _
    $region43: #{rotation_head_forward.1} parent=1 // pred_check_branch
      %114 = sbr.rel (0) target = $region45
    $region44: #{rotation_head_forward.1} parent=1 // pred_region
      _
    $region45: #{rotation_head_forward.1} parent=1 // pred_fallthru
      _
    // Predicated region
    $region46: #{rotation_head_forward.1} parent=1 // pred_check
      _
    $region47: #{rotation_head_forward.1} parent=1 // pred_check_branch
      %116 = sbr.rel (0) target = $region49
    $region48: #{rotation_head_forward.1} parent=1 // pred_region
      %s118 = ssub.s32 1024, 1024
      %119 = vsyncadd [#allocation14], %s118
      %s120 = sshll.u32 [#allocation13], 4
      %s121 = int_to_ptr.vmem [resolvable:$true] %s120
      %126 = dma.hbm_to_vmem [thread:$0]  %s11, 1024, %s121, [#allocation14], 128, 128, 8
    $region49: #{rotation_head_forward.1} parent=1 // pred_fallthru
      _
    // Predicated region
    $region50: #{rotation_head_forward.1} parent=1 // pred_check
      _
    $region51: #{rotation_head_forward.1} parent=1 // pred_check_branch
      %128 = sbr.rel (0) target = $region53
    $region52: #{rotation_head_forward.1} parent=1 // pred_region
      %s130 = ssub.s32 256, 256
      %131 = vsyncadd [#allocation14], %s130
      %s132 = sshll.u32 [#allocation15], 4
      %s133 = int_to_ptr.vmem [resolvable:$true] %s132
      %138 = dma.hbm_to_vmem [thread:$0]  %s12, 256, %s133, [#allocation14], 128, 128, 8
    $region53: #{rotation_head_forward.1} parent=1 // pred_fallthru
      _
    // Predicated region
    $region54: #{rotation_head_forward.1} parent=1 // pred_check
      _
    $region55: #{rotation_head_forward.1} parent=1 // pred_check_branch
      %140 = sbr.rel (0) target = $region57
    $region56: #{rotation_head_forward.1} parent=1 // pred_region
      %141 = dma.done [#allocation3], 256
    $region57: #{rotation_head_forward.1} parent=1 // pred_fallthru
      _
    // Predicated region
    $region58: #{rotation_head_forward.1} parent=1 // pred_check
      _
    $region59: #{rotation_head_forward.1} parent=1 // pred_check_branch
      %143 = sbr.rel (0) target = $region61
    $region60: #{rotation_head_forward.1} parent=1 // pred_region
      %144 = dma.done [#allocation5], 3072
    $region61: #{rotation_head_forward.1} parent=1 // pred_fallthru
      _
    // Predicated region
    $region62: #{rotation_head_forward.1} parent=1 // pred_check
      _
    $region63: #{rotation_head_forward.1} parent=1 // pred_check_branch
      %146 = sbr.rel (0) target = $region65
    $region64: #{rotation_head_forward.1} parent=1 // pred_region
      %147 = dma.done [#allocation5], 1024
    $region65: #{rotation_head_forward.1} parent=1 // pred_fallthru
      _
    // Predicated region
    $region66: #{rotation_head_forward.1} parent=1 // pred_check
      _
    $region67: #{rotation_head_forward.1} parent=1 // pred_check_branch
      %149 = sbr.rel (0) target = $region69
    $region68: #{rotation_head_forward.1} parent=1 // pred_region
      %150 = dma.done [#allocation8], 1024
    $region69: #{rotation_head_forward.1} parent=1 // pred_fallthru
      _
    // Predicated region
    $region70: #{rotation_head_forward.1} parent=1 // pred_check
      _
    $region71: #{rotation_head_forward.1} parent=1 // pred_check_branch
      %152 = sbr.rel (0) target = $region73
    $region72: #{rotation_head_forward.1} parent=1 // pred_region
      %153 = dma.done [#allocation8], 512
    $region73: #{rotation_head_forward.1} parent=1 // pred_fallthru
      _
    // Predicated region
    $region74: #{rotation_head_forward.1} parent=1 // pred_check
      _
    $region75: #{rotation_head_forward.1} parent=1 // pred_check_branch
      %155 = sbr.rel (0) target = $region77
    $region76: #{rotation_head_forward.1} parent=1 // pred_region
      %156 = dma.done [#allocation11], 512
    $region77: #{rotation_head_forward.1} parent=1 // pred_fallthru
      _
    // Predicated region
    $region78: #{rotation_head_forward.1} parent=1 // pred_check
      _
    $region79: #{rotation_head_forward.1} parent=1 // pred_check_branch
      %158 = sbr.rel (0) target = $region81
    $region80: #{rotation_head_forward.1} parent=1 // pred_region
      %159 = dma.done [#allocation11], 256
    $region81: #{rotation_head_forward.1} parent=1 // pred_fallthru
      _
    // Predicated region
    $region82: #{rotation_head_forward.1} parent=1 // pred_check
      _
    $region83: #{rotation_head_forward.1} parent=1 // pred_check_branch
      %161 = sbr.rel (0) target = $region85
    $region84: #{rotation_head_forward.1} parent=1 // pred_region
      %162 = dma.done [#allocation14], 1024
    $region85: #{rotation_head_forward.1} parent=1 // pred_fallthru
      _
    // Predicated region
    $region86: #{rotation_head_forward.1} parent=1 // pred_check
      _
    $region87: #{rotation_head_forward.1} parent=1 // pred_check_branch
      %164 = sbr.rel (0) target = $region89
    $region88: #{rotation_head_forward.1} parent=1 // pred_region
      %165 = dma.done [#allocation14], 256
    $region89: #{rotation_head_forward.1} parent=1 // pred_fallthru
      _
    %v166 = vld [vmem:[#allocation2] sm:$0xff]
    %v167 = vld [vmem:[#allocation2 + $0x8] sm:$0xff]
    %v168 = vld [vmem:[%s10] sm:$0xff]
    %v169 = vld [vmem:[%s10 + $0x8] sm:$0xff]
    %v170 = vld [vmem:[%s10 + $0x10] sm:$0xff]
    %v171 = vld [vmem:[%s10 + $0x18] sm:$0xff]
    %v172 = vld [vmem:[%s10 + $0x20] sm:$0xff]
    %v173 = vld [vmem:[%s10 + $0x28] sm:$0xff]
    %v174 = vld [vmem:[%s10 + $0x30] sm:$0xff]
    %v175 = vld [vmem:[%s10 + $0x38] sm:$0xff]
    %v176 = vld [vmem:[#allocation13] sm:$0xff]
    %v177 = vld [vmem:[#allocation13 + $0x8] sm:$0xff]
    %v178 = vld [vmem:[#allocation13 + $0x10] sm:$0xff]
    %v179 = vld [vmem:[#allocation13 + $0x18] sm:$0xff]
    %v180 = vld [vmem:[#allocation13 + $0x20] sm:$0xff]
    %v181 = vld [vmem:[#allocation13 + $0x28] sm:$0xff]
    %v182 = vld [vmem:[#allocation13 + $0x30] sm:$0xff]
    %v183 = vld [vmem:[#allocation13 + $0x38] sm:$0xff]
    %v184 = vld [vmem:[#allocation15] sm:$0xff]
    %v185 = vld [vmem:[#allocation15 + $0x8] sm:$0xff]
    %v186 = vld [vmem:[%s1] sm:$0xff]
    %v187 = vld [vmem:[%s1 + $0x8] sm:$0xff]
    %v188 = vld [vmem:[%s1 + $0x10] sm:$0xff]
    %v189 = vld [vmem:[%s1 + $0x18] sm:$0xff]
    %v190 = vld [vmem:[%s1 + $0x20] sm:$0xff]
    %v191 = vld [vmem:[%s1 + $0x28] sm:$0xff]
    %v192 = vld [vmem:[%s1 + $0x30] sm:$0xff]
    %v193 = vld [vmem:[%s1 + $0x38] sm:$0xff]
    %v194 = vld [vmem:[%s7] sm:$0xff]
    %v195 = vld [vmem:[%s7 + $0x8] sm:$0xff]
    %vm196 = vcmask 261120
    %v198 = vsel %vm196, %v166, 0
    %v201 = vsel %vm196, %v167, 0
    %203 = vmatprep.subr.mxu0 0.0
    %204 = vmatpush1.msra.mxu0 %v186
    %205 = vmatprep.subr.mxu0 0.0
    %206 = vmatpush1.msra.mxu0 %v187
    %207 = vmatprep.subr.mxu0 0.0
    %208 = vmatpush1.msra.mxu0 %v188
    %209 = vmatprep.subr.mxu0 0.0
    %210 = vmatpush1.msra.mxu0 %v189
    %211 = vmatprep.subr.mxu0 0.0
    %212 = vmatpush1.msra.mxu0 0.0
    %213 = vmatprep.subr.mxu0 0.0
    %214 = vmatpush1.msra.mxu0 0.0
    %215 = vmatprep.subr.mxu0 0.0
    %216 = vmatpush1.msra.mxu0 0.0
    %217 = vmatprep.subr.mxu0 0.0
    %218 = vmatpush1.msra.mxu0 0.0
    %219 = vmatprep.subr.mxu0 0.0
    %220 = vmatpush1.msra.mxu0 0.0
    %221 = vmatprep.subr.mxu0 0.0
    %222 = vmatpush1.msra.mxu0 0.0
    %223 = vmatprep.subr.mxu0 0.0
    %224 = vmatpush1.msra.mxu0 0.0
    %225 = vmatprep.subr.mxu0 0.0
    %226 = vmatpush1.msra.mxu0 0.0
    %227 = vmatprep.subr.mxu0 0.0
    %228 = vmatpush1.msra.mxu0 0.0
    %229 = vmatprep.subr.mxu0 0.0
    %230 = vmatpush1.msra.mxu0 0.0
    %231 = vmatprep.subr.mxu0 0.0
    %232 = vmatpush1.msra.mxu0 0.0
    %233 = vmatprep.subr.mxu0 0.0
    %234 = vmatpush1.msra.mxu0 0.0
    %235 = vmatprep.subr.mxu0 0.0
    %236 = vmatpush1.msra.mxu0 0.0
    %237 = vmatprep.subr.mxu0 0.0
    %238 = vmatpush1.msra.mxu0 0.0
    %239 = vmatprep.subr.mxu0 0.0
    %240 = vmatpush1.msra.mxu0 0.0
    %241 = vmatprep.subr.mxu0 0.0
    %242 = vmatpush1.msra.mxu0 0.0
    %243 = vmatprep.subr.mxu0 0.0
    %244 = vmatpush1.msra.mxu0 0.0
    %245 = vmatprep.subr.mxu0 0.0
    %246 = vmatpush1.msra.mxu0 0.0
    %247 = vmatprep.subr.mxu0 0.0
    %248 = vmatpush1.msra.mxu0 0.0
    %249 = vmatprep.subr.mxu0 0.0
    %250 = vmatpush1.msra.mxu0 0.0
    %251 = vmatprep.subr.mxu0 0.0
    %252 = vmatpush1.msra.mxu0 0.0
    %253 = vmatprep.subr.mxu0 0.0
    %254 = vmatpush1.msra.mxu0 0.0
    %255 = vmatprep.subr.mxu0 0.0
    %256 = vmatpush1.msra.mxu0 0.0
    %257 = vmatprep.subr.mxu0 0.0
    %258 = vmatpush1.msra.mxu0 0.0
    %259 = vmatprep.subr.mxu0 0.0
    %260 = vmatpush1.msra.mxu0 0.0
    %261 = vmatprep.subr.mxu0 0.0
    %262 = vmatpush1.msra.mxu0 0.0
    %263 = vmatprep.subr.mxu0 0.0
    %264 = vmatpush1.msra.mxu0 0.0
    %265 = vmatprep.subr.mxu0 0.0
    %266 = vmatpush1.msra.mxu0 0.0
    %267 = vmatprep.mubr.f32.mxu0 0.0
    %268 = vmatmul.mubr.f32.gmra.mrb[0].mxu0 %v198
    %v269 = vpop.f32.mrb[0].mxu0
    %v270 = vadd.f32 %v194, %v269
    %v271 = vpop.f32.mrb[0].mxu0
    %272 = vmatprep.mubr.f32.mxu0 0.0
    %273 = vmatmul.mubr.f32.gmra.mrb[0].mxu0 %v201
    %v274 = vpop.f32.mrb[0].mxu0
    %v275 = vadd.f32 %v195, %v274
    %v276 = vpop.f32.mrb[0].mxu0
    %277 = vdwg.mxu0
    %v278 = vmax.f32 %v270, 0.0
    %v279 = vmax.f32 %v275, 0.0
    %s280 = scalar_lea.vmem %s7, 16
    %v281 = vld [vmem:[%s280] sm:$0xff]
    %v282 = vld [vmem:[%s280 + $0x8] sm:$0xff]
    %v284 = vsel %vm196, %v278, 0
    %v287 = vsel %vm196, %v279, 0
    %289 = vmatprep.subr.mxu0 0.0
    %290 = vmatpush1.msra.mxu0 %v190
    %291 = vmatprep.subr.mxu0 0.0
    %292 = vmatpush1.msra.mxu0 %v191
    %293 = vmatprep.subr.mxu0 0.0
    %294 = vmatpush1.msra.mxu0 %v192
    %295 = vmatprep.subr.mxu0 0.0
    %296 = vmatpush1.msra.mxu0 %v193
    %297 = vmatprep.subr.mxu0 0.0
    %298 = vmatpush1.msra.mxu0 0.0
    %299 = vmatprep.subr.mxu0 0.0
    %300 = vmatpush1.msra.mxu0 0.0
    %301 = vmatprep.subr.mxu0 0.0
    %302 = vmatpush1.msra.mxu0 0.0
    %303 = vmatprep.subr.mxu0 0.0
    %304 = vmatpush1.msra.mxu0 0.0
    %305 = vmatprep.subr.mxu0 0.0
    %306 = vmatpush1.msra.mxu0 0.0
    %307 = vmatprep.subr.mxu0 0.0
    %308 = vmatpush1.msra.mxu0 0.0
    %309 = vmatprep.subr.mxu0 0.0
    %310 = vmatpush1.msra.mxu0 0.0
    %311 = vmatprep.subr.mxu0 0.0
    %312 = vmatpush1.msra.mxu0 0.0
    %313 = vmatprep.subr.mxu0 0.0
    %314 = vmatpush1.msra.mxu0 0.0
    %315 = vmatprep.subr.mxu0 0.0
    %316 = vmatpush1.msra.mxu0 0.0
    %317 = vmatprep.subr.mxu0 0.0
    %318 = vmatpush1.msra.mxu0 0.0
    %319 = vmatprep.subr.mxu0 0.0
    %320 = vmatpush1.msra.mxu0 0.0
    %321 = vmatprep.subr.mxu0 0.0
    %322 = vmatpush1.msra.mxu0 0.0
    %323 = vmatprep.subr.mxu0 0.0
    %324 = vmatpush1.msra.mxu0 0.0
    %325 = vmatprep.subr.mxu0 0.0
    %326 = vmatpush1.msra.mxu0 0.0
    %327 = vmatprep.subr.mxu0 0.0
    %328 = vmatpush1.msra.mxu0 0.0
    %329 = vmatprep.subr.mxu0 0.0
    %330 = vmatpush1.msra.mxu0 0.0
    %331 = vmatprep.subr.mxu0 0.0
    %332 = vmatpush1.msra.mxu0 0.0
    %333 = vmatprep.subr.mxu0 0.0
    %334 = vmatpush1.msra.mxu0 0.0
    %335 = vmatprep.subr.mxu0 0.0
    %336 = vmatpush1.msra.mxu0 0.0
    %337 = vmatprep.subr.mxu0 0.0
    %338 = vmatpush1.msra.mxu0 0.0
    %339 = vmatprep.subr.mxu0 0.0
    %340 = vmatpush1.msra.mxu0 0.0
    %341 = vmatprep.subr.mxu0 0.0
    %342 = vmatpush1.msra.mxu0 0.0
    %343 = vmatprep.subr.mxu0 0.0
    %344 = vmatpush1.msra.mxu0 0.0
    %345 = vmatprep.subr.mxu0 0.0
    %346 = vmatpush1.msra.mxu0 0.0
    %347 = vmatprep.subr.mxu0 0.0
    %348 = vmatpush1.msra.mxu0 0.0
    %349 = vmatprep.subr.mxu0 0.0
    %350 = vmatpush1.msra.mxu0 0.0
    %351 = vmatprep.subr.mxu0 0.0
    %352 = vmatpush1.msra.mxu0 0.0
    %353 = vmatprep.mubr.f32.mxu0 0.0
    %354 = vmatmul.mubr.f32.gmra.mrb[0].mxu0 %v284
    %v355 = vpop.f32.mrb[0].mxu0
    %v356 = vadd.f32 %v281, %v355
    %v357 = vpop.f32.mrb[0].mxu0
    %358 = vmatprep.mubr.f32.mxu0 0.0
    %359 = vmatmul.mubr.f32.gmra.mrb[0].mxu0 %v287
    %v360 = vpop.f32.mrb[0].mxu0
    %v361 = vadd.f32 %v282, %v360
    %v362 = vpop.f32.mrb[0].mxu0
    %363 = vdwg.mxu0
    %v364 = vmax.f32 %v356, 0.0
    %v365 = vmax.f32 %v361, 0.0
    %v366 = vld [vmem:[#allocation4] sm:$0xff]
    %v367 = vld [vmem:[#allocation4 + $0x8] sm:$0xff]
    %v368 = vld [vmem:[#allocation4 + $0x10] sm:$0xff]
    %v369 = vld [vmem:[#allocation4 + $0x18] sm:$0xff]
    %s370 = scalar_lea.vmem %s7, 32
    %v371 = vld [vmem:[%s370] sm:$0xff]
    %v372 = vld [vmem:[%s370 + $0x8] sm:$0xff]
    %v374 = vsel %vm196, %v364, 0
    %v377 = vsel %vm196, %v365, 0
    %379 = vmatprep.subr.mxu0 0.0
    %380 = vmatpush1.msra.mxu0 %v366
    %381 = vmatprep.subr.mxu0 0.0
    %382 = vmatpush1.msra.mxu0 %v367
    %383 = vmatprep.subr.mxu0 0.0
    %384 = vmatpush1.msra.mxu0 %v368
    %385 = vmatprep.subr.mxu0 0.0
    %386 = vmatpush1.msra.mxu0 %v369
    %387 = vmatprep.subr.mxu0 0.0
    %388 = vmatpush1.msra.mxu0 0.0
    %389 = vmatprep.subr.mxu0 0.0
    %390 = vmatpush1.msra.mxu0 0.0
    %391 = vmatprep.subr.mxu0 0.0
    %392 = vmatpush1.msra.mxu0 0.0
    %393 = vmatprep.subr.mxu0 0.0
    %394 = vmatpush1.msra.mxu0 0.0
    %395 = vmatprep.subr.mxu0 0.0
    %396 = vmatpush1.msra.mxu0 0.0
    %397 = vmatprep.subr.mxu0 0.0
    %398 = vmatpush1.msra.mxu0 0.0
    %399 = vmatprep.subr.mxu0 0.0
    %400 = vmatpush1.msra.mxu0 0.0
    %401 = vmatprep.subr.mxu0 0.0
    %402 = vmatpush1.msra.mxu0 0.0
    %403 = vmatprep.subr.mxu0 0.0
    %404 = vmatpush1.msra.mxu0 0.0
    %405 = vmatprep.subr.mxu0 0.0
    %406 = vmatpush1.msra.mxu0 0.0
    %407 = vmatprep.subr.mxu0 0.0
    %408 = vmatpush1.msra.mxu0 0.0
    %409 = vmatprep.subr.mxu0 0.0
    %410 = vmatpush1.msra.mxu0 0.0
    %411 = vmatprep.subr.mxu0 0.0
    %412 = vmatpush1.msra.mxu0 0.0
    %413 = vmatprep.subr.mxu0 0.0
    %414 = vmatpush1.msra.mxu0 0.0
    %415 = vmatprep.subr.mxu0 0.0
    %416 = vmatpush1.msra.mxu0 0.0
    %417 = vmatprep.subr.mxu0 0.0
    %418 = vmatpush1.msra.mxu0 0.0
    %419 = vmatprep.subr.mxu0 0.0
    %420 = vmatpush1.msra.mxu0 0.0
    %421 = vmatprep.subr.mxu0 0.0
    %422 = vmatpush1.msra.mxu0 0.0
    %423 = vmatprep.subr.mxu0 0.0
    %424 = vmatpush1.msra.mxu0 0.0
    %425 = vmatprep.subr.mxu0 0.0
    %426 = vmatpush1.msra.mxu0 0.0
    %427 = vmatprep.subr.mxu0 0.0
    %428 = vmatpush1.msra.mxu0 0.0
    %429 = vmatprep.subr.mxu0 0.0
    %430 = vmatpush1.msra.mxu0 0.0
    %431 = vmatprep.subr.mxu0 0.0
    %432 = vmatpush1.msra.mxu0 0.0
    %433 = vmatprep.subr.mxu0 0.0
    %434 = vmatpush1.msra.mxu0 0.0
    %435 = vmatprep.subr.mxu0 0.0
    %436 = vmatpush1.msra.mxu0 0.0
    %437 = vmatprep.subr.mxu0 0.0
    %438 = vmatpush1.msra.mxu0 0.0
    %439 = vmatprep.subr.mxu0 0.0
    %440 = vmatpush1.msra.mxu0 0.0
    %441 = vmatprep.subr.mxu0 0.0
    %442 = vmatpush1.msra.mxu0 0.0
    %443 = vmatprep.mubr.f32.mxu0 0.0
    %444 = vmatmul.mubr.f32.gmra.mrb[0].mxu0 %v374
    %v445 = vpop.f32.mrb[0].mxu0
    %v446 = vadd.f32 %v371, %v445
    %v447 = vpop.f32.mrb[0].mxu0
    %448 = vmatprep.mubr.f32.mxu0 0.0
    %449 = vmatmul.mubr.f32.gmra.mrb[0].mxu0 %v377
    %v450 = vpop.f32.mrb[0].mxu0
    %v451 = vadd.f32 %v372, %v450
    %v452 = vpop.f32.mrb[0].mxu0
    %453 = vdwg.mxu0
    %s454 = scalar_lea.vmem [#allocation4], 32
    %v455 = vld [vmem:[%s454] sm:$0xff]
    %v456 = vld [vmem:[%s454 + $0x8] sm:$0xff]
    %v457 = vld [vmem:[%s454 + $0x10] sm:$0xff]
    %v458 = vld [vmem:[%s454 + $0x18] sm:$0xff]
    %s459 = scalar_lea.vmem %s7, 48
    %v460 = vld [vmem:[%s459] sm:$0xff]
    %v461 = vld [vmem:[%s459 + $0x8] sm:$0xff]
    %462 = vmatprep.subr.mxu0 0.0
    %463 = vmatpush1.msra.mxu0 %v455
    %464 = vmatprep.subr.mxu0 0.0
    %465 = vmatpush1.msra.mxu0 %v456
    %466 = vmatprep.subr.mxu0 0.0
    %467 = vmatpush1.msra.mxu0 %v457
    %468 = vmatprep.subr.mxu0 0.0
    %469 = vmatpush1.msra.mxu0 %v458
    %470 = vmatprep.subr.mxu0 0.0
    %471 = vmatpush1.msra.mxu0 0.0
    %472 = vmatprep.subr.mxu0 0.0
    %473 = vmatpush1.msra.mxu0 0.0
    %474 = vmatprep.subr.mxu0 0.0
    %475 = vmatpush1.msra.mxu0 0.0
    %476 = vmatprep.subr.mxu0 0.0
    %477 = vmatpush1.msra.mxu0 0.0
    %478 = vmatprep.subr.mxu0 0.0
    %479 = vmatpush1.msra.mxu0 0.0
    %480 = vmatprep.subr.mxu0 0.0
    %481 = vmatpush1.msra.mxu0 0.0
    %482 = vmatprep.subr.mxu0 0.0
    %483 = vmatpush1.msra.mxu0 0.0
    %484 = vmatprep.subr.mxu0 0.0
    %485 = vmatpush1.msra.mxu0 0.0
    %486 = vmatprep.subr.mxu0 0.0
    %487 = vmatpush1.msra.mxu0 0.0
    %488 = vmatprep.subr.mxu0 0.0
    %489 = vmatpush1.msra.mxu0 0.0
    %490 = vmatprep.subr.mxu0 0.0
    %491 = vmatpush1.msra.mxu0 0.0
    %492 = vmatprep.subr.mxu0 0.0
    %493 = vmatpush1.msra.mxu0 0.0
    %494 = vmatprep.subr.mxu0 0.0
    %495 = vmatpush1.msra.mxu0 0.0
    %496 = vmatprep.subr.mxu0 0.0
    %497 = vmatpush1.msra.mxu0 0.0
    %498 = vmatprep.subr.mxu0 0.0
    %499 = vmatpush1.msra.mxu0 0.0
    %500 = vmatprep.subr.mxu0 0.0
    %501 = vmatpush1.msra.mxu0 0.0
    %502 = vmatprep.subr.mxu0 0.0
    %503 = vmatpush1.msra.mxu0 0.0
    %504 = vmatprep.subr.mxu0 0.0
    %505 = vmatpush1.msra.mxu0 0.0
    %506 = vmatprep.subr.mxu0 0.0
    %507 = vmatpush1.msra.mxu0 0.0
    %508 = vmatprep.subr.mxu0 0.0
    %509 = vmatpush1.msra.mxu0 0.0
    %510 = vmatprep.subr.mxu0 0.0
    %511 = vmatpush1.msra.mxu0 0.0
    %512 = vmatprep.subr.mxu0 0.0
    %513 = vmatpush1.msra.mxu0 0.0
    %514 = vmatprep.subr.mxu0 0.0
    %515 = vmatpush1.msra.mxu0 0.0
    %516 = vmatprep.subr.mxu0 0.0
    %517 = vmatpush1.msra.mxu0 0.0
    %518 = vmatprep.subr.mxu0 0.0
    %519 = vmatpush1.msra.mxu0 0.0
    %520 = vmatprep.subr.mxu0 0.0
    %521 = vmatpush1.msra.mxu0 0.0
    %522 = vmatprep.subr.mxu0 0.0
    %523 = vmatpush1.msra.mxu0 0.0
    %524 = vmatprep.subr.mxu0 0.0
    %525 = vmatpush1.msra.mxu0 0.0
    %526 = vmatprep.mubr.f32.mxu0 0.0
    %527 = vmatmul.mubr.f32.gmra.mrb[0].mxu0 %v374
    %v528 = vpop.f32.mrb[0].mxu0
    %v529 = vadd.f32 %v460, %v528
    %v530 = vpop.f32.mrb[0].mxu0
    %531 = vmatprep.mubr.f32.mxu0 0.0
    %532 = vmatmul.mubr.f32.gmra.mrb[0].mxu0 %v377
    %v533 = vpop.f32.mrb[0].mxu0
    %v534 = vadd.f32 %v461, %v533
    %v535 = vpop.f32.mrb[0].mxu0
    %536 = vdwg.mxu0
    %s537 = scalar_lea.vmem [#allocation4], 64
    %v538 = vld [vmem:[%s537] sm:$0xff]
    %v539 = vld [vmem:[%s537 + $0x8] sm:$0xff]
    %v540 = vld [vmem:[%s537 + $0x10] sm:$0xff]
    %v541 = vld [vmem:[%s537 + $0x18] sm:$0xff]
    %s542 = scalar_lea.vmem %s7, 64
    %v543 = vld [vmem:[%s542] sm:$0xff]
    %v544 = vld [vmem:[%s542 + $0x8] sm:$0xff]
    %545 = vmatprep.subr.mxu0 0.0
    %546 = vmatpush1.msra.mxu0 %v538
    %547 = vmatprep.subr.mxu0 0.0
    %548 = vmatpush1.msra.mxu0 %v539
    %549 = vmatprep.subr.mxu0 0.0
    %550 = vmatpush1.msra.mxu0 %v540
    %551 = vmatprep.subr.mxu0 0.0
    %552 = vmatpush1.msra.mxu0 %v541
    %553 = vmatprep.subr.mxu0 0.0
    %554 = vmatpush1.msra.mxu0 0.0
    %555 = vmatprep.subr.mxu0 0.0
    %556 = vmatpush1.msra.mxu0 0.0
    %557 = vmatprep.subr.mxu0 0.0
    %558 = vmatpush1.msra.mxu0 0.0
    %559 = vmatprep.subr.mxu0 0.0
    %560 = vmatpush1.msra.mxu0 0.0
    %561 = vmatprep.subr.mxu0 0.0
    %562 = vmatpush1.msra.mxu0 0.0
    %563 = vmatprep.subr.mxu0 0.0
    %564 = vmatpush1.msra.mxu0 0.0
    %565 = vmatprep.subr.mxu0 0.0
    %566 = vmatpush1.msra.mxu0 0.0
    %567 = vmatprep.subr.mxu0 0.0
    %568 = vmatpush1.msra.mxu0 0.0
    %569 = vmatprep.subr.mxu0 0.0
    %570 = vmatpush1.msra.mxu0 0.0
    %571 = vmatprep.subr.mxu0 0.0
    %572 = vmatpush1.msra.mxu0 0.0
    %573 = vmatprep.subr.mxu0 0.0
    %574 = vmatpush1.msra.mxu0 0.0
    %575 = vmatprep.subr.mxu0 0.0
    %576 = vmatpush1.msra.mxu0 0.0
    %577 = vmatprep.subr.mxu0 0.0
    %578 = vmatpush1.msra.mxu0 0.0
    %579 = vmatprep.subr.mxu0 0.0
    %580 = vmatpush1.msra.mxu0 0.0
    %581 = vmatprep.subr.mxu0 0.0
    %582 = vmatpush1.msra.mxu0 0.0
    %583 = vmatprep.subr.mxu0 0.0
    %584 = vmatpush1.msra.mxu0 0.0
    %585 = vmatprep.subr.mxu0 0.0
    %586 = vmatpush1.msra.mxu0 0.0
    %587 = vmatprep.subr.mxu0 0.0
    %588 = vmatpush1.msra.mxu0 0.0
    %589 = vmatprep.subr.mxu0 0.0
    %590 = vmatpush1.msra.mxu0 0.0
    %591 = vmatprep.subr.mxu0 0.0
    %592 = vmatpush1.msra.mxu0 0.0
    %593 = vmatprep.subr.mxu0 0.0
    %594 = vmatpush1.msra.mxu0 0.0
    %595 = vmatprep.subr.mxu0 0.0
    %596 = vmatpush1.msra.mxu0 0.0
    %597 = vmatprep.subr.mxu0 0.0
    %598 = vmatpush1.msra.mxu0 0.0
    %599 = vmatprep.subr.mxu0 0.0
    %600 = vmatpush1.msra.mxu0 0.0
    %601 = vmatprep.subr.mxu0 0.0
    %602 = vmatpush1.msra.mxu0 0.0
    %603 = vmatprep.subr.mxu0 0.0
    %604 = vmatpush1.msra.mxu0 0.0
    %605 = vmatprep.subr.mxu0 0.0
    %606 = vmatpush1.msra.mxu0 0.0
    %607 = vmatprep.subr.mxu0 0.0
    %608 = vmatpush1.msra.mxu0 0.0
    %609 = vmatprep.mubr.f32.mxu0 0.0
    %610 = vmatmul.mubr.f32.gmra.mrb[0].mxu0 %v374
    %v611 = vpop.f32.mrb[0].mxu0
    %v612 = vadd.f32 %v543, %v611
    %v613 = vpop.f32.mrb[0].mxu0
    %614 = vmatprep.mubr.f32.mxu0 0.0
    %615 = vmatmul.mubr.f32.gmra.mrb[0].mxu0 %v377
    %v616 = vpop.f32.mrb[0].mxu0
    %v617 = vadd.f32 %v544, %v616
    %v618 = vpop.f32.mrb[0].mxu0
    %619 = vdwg.mxu0
    %v620 = vmul.f32 %v529, %v168
    %v621 = vmul.f32 %v534, %v169
    %v622 = vmul.f32 %v529, %v170
    %v623 = vmul.f32 %v534, %v171
    %v624 = vmul.f32 %v529, %v172
    %v625 = vmul.f32 %v534, %v173
    %v626 = vmul.f32 %v529, %v174
    %v627 = vmul.f32 %v534, %v175
    %v628 = vmul.f32 %v612, %v168
    %v629 = vmul.f32 %v617, %v169
    %v630 = vmul.f32 %v612, %v170
    %v631 = vmul.f32 %v617, %v171
    %v632 = vmul.f32 %v612, %v172
    %v633 = vmul.f32 %v617, %v173
    %v634 = vmul.f32 %v612, %v174
    %v635 = vmul.f32 %v617, %v175
    %v637 = vsel %vm196, %v446, 0
    %v640 = vsel %vm196, %v451, 0
    %v643 = vsel %vm196, %v620, 0
    %v646 = vsel %vm196, %v621, 0
    %v649 = vsel %vm196, %v622, 0
    %v652 = vsel %vm196, %v623, 0
    %v655 = vsel %vm196, %v624, 0
    %v658 = vsel %vm196, %v625, 0
    %v661 = vsel %vm196, %v626, 0
    %v664 = vsel %vm196, %v627, 0
    %666 = vmatprep.subr.mxu0 0.0
    %667 = vmatpush1.xpose.msra.mxu0 %v643
    %668 = vmatprep.subr.mxu0 0.0
    %669 = vmatpush1.xpose.msra.mxu0 %v646
    %670 = vmatprep.subr.mxu0 0.0
    %671 = vmatpush1.xpose.msra.mxu0 %v649
    %672 = vmatprep.subr.mxu0 0.0
    %673 = vmatpush1.xpose.msra.mxu0 %v652
    %674 = vmatprep.subr.mxu0 0.0
    %675 = vmatpush1.xpose.msra.mxu0 %v655
    %676 = vmatprep.subr.mxu0 0.0
    %677 = vmatpush1.xpose.msra.mxu0 %v658
    %678 = vmatprep.subr.mxu0 0.0
    %679 = vmatpush1.xpose.msra.mxu0 %v661
    %680 = vmatprep.subr.mxu0 0.0
    %681 = vmatpush1.xpose.msra.mxu0 %v664
    %682 = vmatprep.subr.mxu0 0.0
    %683 = vmatpush1.xpose.msra.mxu0 0.0
    %684 = vmatprep.subr.mxu0 0.0
    %685 = vmatpush1.xpose.msra.mxu0 0.0
    %686 = vmatprep.subr.mxu0 0.0
    %687 = vmatpush1.xpose.msra.mxu0 0.0
    %688 = vmatprep.subr.mxu0 0.0
    %689 = vmatpush1.xpose.msra.mxu0 0.0
    %690 = vmatprep.subr.mxu0 0.0
    %691 = vmatpush1.xpose.msra.mxu0 0.0
    %692 = vmatprep.subr.mxu0 0.0
    %693 = vmatpush1.xpose.msra.mxu0 0.0
    %694 = vmatprep.subr.mxu0 0.0
    %695 = vmatpush1.xpose.msra.mxu0 0.0
    %696 = vmatprep.subr.mxu0 0.0
    %697 = vmatpush1.xpose.msra.mxu0 0.0
    %698 = vmatprep.subr.mxu0 0.0
    %699 = vmatpush1.xpose.msra.mxu0 0.0
    %700 = vmatprep.subr.mxu0 0.0
    %701 = vmatpush1.xpose.msra.mxu0 0.0
    %702 = vmatprep.subr.mxu0 0.0
    %703 = vmatpush1.xpose.msra.mxu0 0.0
    %704 = vmatprep.subr.mxu0 0.0
    %705 = vmatpush1.xpose.msra.mxu0 0.0
    %706 = vmatprep.subr.mxu0 0.0
    %707 = vmatpush1.xpose.msra.mxu0 0.0
    %708 = vmatprep.subr.mxu0 0.0
    %709 = vmatpush1.xpose.msra.mxu0 0.0
    %710 = vmatprep.subr.mxu0 0.0
    %711 = vmatpush1.xpose.msra.mxu0 0.0
    %712 = vmatprep.subr.mxu0 0.0
    %713 = vmatpush1.xpose.msra.mxu0 0.0
    %714 = vmatprep.subr.mxu0 0.0
    %715 = vmatpush1.xpose.msra.mxu0 0.0
    %716 = vmatprep.subr.mxu0 0.0
    %717 = vmatpush1.xpose.msra.mxu0 0.0
    %718 = vmatprep.subr.mxu0 0.0
    %719 = vmatpush1.xpose.msra.mxu0 0.0
    %720 = vmatprep.subr.mxu0 0.0
    %721 = vmatpush1.xpose.msra.mxu0 0.0
    %722 = vmatprep.subr.mxu0 0.0
    %723 = vmatpush1.xpose.msra.mxu0 0.0
    %724 = vmatprep.subr.mxu0 0.0
    %725 = vmatpush1.xpose.msra.mxu0 0.0
    %726 = vmatprep.subr.mxu0 0.0
    %727 = vmatpush1.xpose.msra.mxu0 0.0
    %728 = vmatprep.subr.mxu0 0.0
    %729 = vmatpush1.xpose.msra.mxu0 0.0
    %730 = vmatprep.mubr.f32.mxu0 0.0
    %731 = vmatmul.mubr.f32.gmra.mrb[0].mxu0 %v637
    %v732 = vpop.f32.mrb[0].mxu0
    %v733 = vadd.f32 %v184, %v732
    %v734 = vpop.f32.mrb[0].mxu0
    %735 = vmatprep.mubr.f32.mxu0 0.0
    %736 = vmatmul.mubr.f32.gmra.mrb[0].mxu0 %v640
    %v737 = vpop.f32.mrb[0].mxu0
    %v738 = vadd.f32 %v185, %v737
    %v739 = vpop.f32.mrb[0].mxu0
    %740 = vdwg.mxu0
    %vm741 = vcmask 523264
    %v742 = vsel %vm741, %v733, -inf
    %743 = vmax.xlane.f32.xlu0 %v742
    %v744 = vpop.xlane.xlu0 %743
    %v745 = vsel %vm741, %v738, -inf
    %746 = vmax.xlane.f32.xlu0 %v745
    %v747 = vpop.xlane.xlu0 %746
    %v748 = vsub.f32 %v733, %v744
    %v749 = vsub.f32 %v738, %v747
    %v750 = vmul.f32 %v748, 1.442695
    %v751 = vpow.pop %v750
    %v752 = vmul.f32 %v749, 1.442695
    %v753 = vpow.pop %v752
    %v755 = vsel %vm741, %v751, 0
    %v758 = vsel %vm741, %v753, 0
    %760 = vmatprep.subr.mxu0 0.0
    %761 = vmatpush1.msra.mxu0 %v176
    %762 = vmatprep.subr.mxu0 0.0
    %763 = vmatpush1.msra.mxu0 %v177
    %764 = vmatprep.subr.mxu0 0.0
    %765 = vmatpush1.msra.mxu0 %v178
    %766 = vmatprep.subr.mxu0 0.0
    %767 = vmatpush1.msra.mxu0 %v179
    %768 = vmatprep.subr.mxu0 0.0
    %769 = vmatpush1.msra.mxu0 %v180
    %770 = vmatprep.subr.mxu0 0.0
    %771 = vmatpush1.msra.mxu0 %v181
    %772 = vmatprep.subr.mxu0 0.0
    %773 = vmatpush1.msra.mxu0 %v182
    %774 = vmatprep.subr.mxu0 0.0
    %775 = vmatpush1.msra.mxu0 %v183
    %776 = vmatprep.subr.mxu0 0.0
    %777 = vmatpush1.msra.mxu0 0.0
    %778 = vmatprep.subr.mxu0 0.0
    %779 = vmatpush1.msra.mxu0 0.0
    %780 = vmatprep.subr.mxu0 0.0
    %781 = vmatpush1.msra.mxu0 0.0
    %782 = vmatprep.subr.mxu0 0.0
    %783 = vmatpush1.msra.mxu0 0.0
    %784 = vmatprep.subr.mxu0 0.0
    %785 = vmatpush1.msra.mxu0 0.0
    %786 = vmatprep.subr.mxu0 0.0
    %787 = vmatpush1.msra.mxu0 0.0
    %788 = vmatprep.subr.mxu0 0.0
    %789 = vmatpush1.msra.mxu0 0.0
    %790 = vmatprep.subr.mxu0 0.0
    %791 = vmatpush1.msra.mxu0 0.0
    %792 = vmatprep.subr.mxu0 0.0
    %793 = vmatpush1.msra.mxu0 0.0
    %794 = vmatprep.subr.mxu0 0.0
    %795 = vmatpush1.msra.mxu0 0.0
    %796 = vmatprep.subr.mxu0 0.0
    %797 = vmatpush1.msra.mxu0 0.0
    %798 = vmatprep.subr.mxu0 0.0
    %799 = vmatpush1.msra.mxu0 0.0
    %800 = vmatprep.subr.mxu0 0.0
    %801 = vmatpush1.msra.mxu0 0.0
    %802 = vmatprep.subr.mxu0 0.0
    %803 = vmatpush1.msra.mxu0 0.0
    %804 = vmatprep.subr.mxu0 0.0
    %805 = vmatpush1.msra.mxu0 0.0
    %806 = vmatprep.subr.mxu0 0.0
    %807 = vmatpush1.msra.mxu0 0.0
    %808 = vmatprep.subr.mxu0 0.0
    %809 = vmatpush1.msra.mxu0 0.0
    %810 = vmatprep.subr.mxu0 0.0
    %811 = vmatpush1.msra.mxu0 0.0
    %812 = vmatprep.subr.mxu0 0.0
    %813 = vmatpush1.msra.mxu0 0.0
    %814 = vmatprep.subr.mxu0 0.0
    %815 = vmatpush1.msra.mxu0 0.0
    %816 = vmatprep.subr.mxu0 0.0
    %817 = vmatpush1.msra.mxu0 0.0
    %818 = vmatprep.subr.mxu0 0.0
    %819 = vmatpush1.msra.mxu0 0.0
    %820 = vmatprep.subr.mxu0 0.0
    %821 = vmatpush1.msra.mxu0 0.0
    %822 = vmatprep.subr.mxu0 0.0
    %823 = vmatpush1.msra.mxu0 0.0
    %824 = vmatprep.mubr.f32.mxu0 0.0
    %825 = vmatmul.mubr.f32.gmra.mrb[0].mxu0 %v755
    %v826 = vpop.f32.mrb[0].mxu0
    %v827 = vadd.f32 1e-20, %v826
    %v828 = vpop.f32.mrb[0].mxu0
    %829 = vmatprep.mubr.f32.mxu0 0.0
    %830 = vmatmul.mubr.f32.gmra.mrb[0].mxu0 %v758
    %v831 = vpop.f32.mrb[0].mxu0
    %v832 = vadd.f32 1e-20, %v831
    %v833 = vpop.f32.mrb[0].mxu0
    %834 = vdwg.mxu0
    %v835 = vrcp.pop %v827
    %v836 = vrcp.pop %v832
    %v837 = vmul.f32 %v751, %v835
    %v838 = vmul.f32 %v753, %v836
    %v840 = vsel %vm741, %v837, 0
    %v843 = vsel %vm741, %v838, 0
    %845 = vmatprep.subr.mxu0 0.0
    %846 = vmatpush1.msra.mxu0 %v628
    %847 = vmatprep.subr.mxu0 0.0
    %848 = vmatpush1.msra.mxu0 %v629
    %849 = vmatprep.subr.mxu0 0.0
    %850 = vmatpush1.msra.mxu0 %v630
    %851 = vmatprep.subr.mxu0 0.0
    %852 = vmatpush1.msra.mxu0 %v631
    %853 = vmatprep.subr.mxu0 0.0
    %854 = vmatpush1.msra.mxu0 %v632
    %855 = vmatprep.subr.mxu0 0.0
    %856 = vmatpush1.msra.mxu0 %v633
    %857 = vmatprep.subr.mxu0 0.0
    %858 = vmatpush1.msra.mxu0 %v634
    %859 = vmatprep.subr.mxu0 0.0
    %860 = vmatpush1.msra.mxu0 %v635
    %861 = vmatprep.subr.mxu0 0.0
    %862 = vmatpush1.msra.mxu0 0.0
    %863 = vmatprep.subr.mxu0 0.0
    %864 = vmatpush1.msra.mxu0 0.0
    %865 = vmatprep.subr.mxu0 0.0
    %866 = vmatpush1.msra.mxu0 0.0
    %867 = vmatprep.subr.mxu0 0.0
    %868 = vmatpush1.msra.mxu0 0.0
    %869 = vmatprep.subr.mxu0 0.0
    %870 = vmatpush1.msra.mxu0 0.0
    %871 = vmatprep.subr.mxu0 0.0
    %872 = vmatpush1.msra.mxu0 0.0
    %873 = vmatprep.subr.mxu0 0.0
    %874 = vmatpush1.msra.mxu0 0.0
    %875 = vmatprep.subr.mxu0 0.0
    %876 = vmatpush1.msra.mxu0 0.0
    %877 = vmatprep.subr.mxu0 0.0
    %878 = vmatpush1.msra.mxu0 0.0
    %879 = vmatprep.subr.mxu0 0.0
    %880 = vmatpush1.msra.mxu0 0.0
    %881 = vmatprep.subr.mxu0 0.0
    %882 = vmatpush1.msra.mxu0 0.0
    %883 = vmatprep.subr.mxu0 0.0
    %884 = vmatpush1.msra.mxu0 0.0
    %885 = vmatprep.subr.mxu0 0.0
    %886 = vmatpush1.msra.mxu0 0.0
    %887 = vmatprep.subr.mxu0 0.0
    %888 = vmatpush1.msra.mxu0 0.0
    %889 = vmatprep.subr.mxu0 0.0
    %890 = vmatpush1.msra.mxu0 0.0
    %891 = vmatprep.subr.mxu0 0.0
    %892 = vmatpush1.msra.mxu0 0.0
    %893 = vmatprep.subr.mxu0 0.0
    %894 = vmatpush1.msra.mxu0 0.0
    %895 = vmatprep.subr.mxu0 0.0
    %896 = vmatpush1.msra.mxu0 0.0
    %897 = vmatprep.subr.mxu0 0.0
    %898 = vmatpush1.msra.mxu0 0.0
    %899 = vmatprep.subr.mxu0 0.0
    %900 = vmatpush1.msra.mxu0 0.0
    %901 = vmatprep.subr.mxu0 0.0
    %902 = vmatpush1.msra.mxu0 0.0
    %903 = vmatprep.subr.mxu0 0.0
    %904 = vmatpush1.msra.mxu0 0.0
    %905 = vmatprep.subr.mxu0 0.0
    %906 = vmatpush1.msra.mxu0 0.0
    %907 = vmatprep.subr.mxu0 0.0
    %908 = vmatpush1.msra.mxu0 0.0
    %909 = vmatprep.mubr.f32.mxu0 0.0
    %910 = vmatmul.mubr.f32.gmra.mrb[0].mxu0 %v840
    %v911 = vpop.f32.mrb[0].mxu0
    %v912 = vadd.f32 0.0, %v911
    %v913 = vpop.f32.mrb[0].mxu0
    %914 = vmatprep.mubr.f32.mxu0 0.0
    %915 = vmatmul.mubr.f32.gmra.mrb[0].mxu0 %v843
    %v916 = vpop.f32.mrb[0].mxu0
    %v917 = vadd.f32 0.0, %v916
    %v918 = vpop.f32.mrb[0].mxu0
    %919 = vdwg.mxu0
    %v920 = vld [vmem:[#allocation6] sm:$0xff]
    %v921 = vld [vmem:[#allocation6 + $0x8] sm:$0xff]
    %v922 = vld [vmem:[#allocation6 + $0x10] sm:$0xff]
    %v923 = vld [vmem:[#allocation6 + $0x18] sm:$0xff]
    %s924 = scalar_lea.vmem %s7, 80
    %v925 = vld [vmem:[%s924] sm:$0xff]
    %v926 = vld [vmem:[%s924 + $0x8] sm:$0xff]
    %v928 = vsel %vm196, %v912, 0
    %v931 = vsel %vm196, %v917, 0
    %933 = vmatprep.subr.mxu0 0.0
    %934 = vmatpush1.msra.mxu0 %v920
    %935 = vmatprep.subr.mxu0 0.0
    %936 = vmatpush1.msra.mxu0 %v921
    %937 = vmatprep.subr.mxu0 0.0
    %938 = vmatpush1.msra.mxu0 %v922
    %939 = vmatprep.subr.mxu0 0.0
    %940 = vmatpush1.msra.mxu0 %v923
    %941 = vmatprep.subr.mxu0 0.0
    %942 = vmatpush1.msra.mxu0 0.0
    %943 = vmatprep.subr.mxu0 0.0
    %944 = vmatpush1.msra.mxu0 0.0
    %945 = vmatprep.subr.mxu0 0.0
    %946 = vmatpush1.msra.mxu0 0.0
    %947 = vmatprep.subr.mxu0 0.0
    %948 = vmatpush1.msra.mxu0 0.0
    %949 = vmatprep.subr.mxu0 0.0
    %950 = vmatpush1.msra.mxu0 0.0
    %951 = vmatprep.subr.mxu0 0.0
    %952 = vmatpush1.msra.mxu0 0.0
    %953 = vmatprep.subr.mxu0 0.0
    %954 = vmatpush1.msra.mxu0 0.0
    %955 = vmatprep.subr.mxu0 0.0
    %956 = vmatpush1.msra.mxu0 0.0
    %957 = vmatprep.subr.mxu0 0.0
    %958 = vmatpush1.msra.mxu0 0.0
    %959 = vmatprep.subr.mxu0 0.0
    %960 = vmatpush1.msra.mxu0 0.0
    %961 = vmatprep.subr.mxu0 0.0
    %962 = vmatpush1.msra.mxu0 0.0
    %963 = vmatprep.subr.mxu0 0.0
    %964 = vmatpush1.msra.mxu0 0.0
    %965 = vmatprep.subr.mxu0 0.0
    %966 = vmatpush1.msra.mxu0 0.0
    %967 = vmatprep.subr.mxu0 0.0
    %968 = vmatpush1.msra.mxu0 0.0
    %969 = vmatprep.subr.mxu0 0.0
    %970 = vmatpush1.msra.mxu0 0.0
    %971 = vmatprep.subr.mxu0 0.0
    %972 = vmatpush1.msra.mxu0 0.0
    %973 = vmatprep.subr.mxu0 0.0
    %974 = vmatpush1.msra.mxu0 0.0
    %975 = vmatprep.subr.mxu0 0.0
    %976 = vmatpush1.msra.mxu0 0.0
    %977 = vmatprep.subr.mxu0 0.0
    %978 = vmatpush1.msra.mxu0 0.0
    %979 = vmatprep.subr.mxu0 0.0
    %980 = vmatpush1.msra.mxu0 0.0
    %981 = vmatprep.subr.mxu0 0.0
    %982 = vmatpush1.msra.mxu0 0.0
    %983 = vmatprep.subr.mxu0 0.0
    %984 = vmatpush1.msra.mxu0 0.0
    %985 = vmatprep.subr.mxu0 0.0
    %986 = vmatpush1.msra.mxu0 0.0
    %987 = vmatprep.subr.mxu0 0.0
    %988 = vmatpush1.msra.mxu0 0.0
    %989 = vmatprep.subr.mxu0 0.0
    %990 = vmatpush1.msra.mxu0 0.0
    %991 = vmatprep.subr.mxu0 0.0
    %992 = vmatpush1.msra.mxu0 0.0
    %993 = vmatprep.subr.mxu0 0.0
    %994 = vmatpush1.msra.mxu0 0.0
    %995 = vmatprep.subr.mxu0 0.0
    %996 = vmatpush1.msra.mxu0 0.0
    %997 = vmatprep.mubr.f32.mxu0 0.0
    %998 = vmatmul.mubr.f32.gmra.mrb[0].mxu0 %v928
    %v999 = vpop.f32.mrb[0].mxu0
    %v1000 = vadd.f32 %v925, %v999
    %v1001 = vpop.f32.mrb[0].mxu0
    %1002 = vmatprep.mubr.f32.mxu0 0.0
    %1003 = vmatmul.mubr.f32.gmra.mrb[0].mxu0 %v931
    %v1004 = vpop.f32.mrb[0].mxu0
    %v1005 = vadd.f32 %v926, %v1004
    %v1006 = vpop.f32.mrb[0].mxu0
    %1007 = vdwg.mxu0
    %v1008 = vadd.f32 %v364, %v1000
    %v1009 = vadd.f32 %v365, %v1005
    %s1010 = scalar_lea.vmem %s7, 96
    %v1011 = vld [vmem:[%s1010] sm:$0xff]
    %v1012 = vld [vmem:[%s1010 + $0x8] sm:$0xff]
    %s1013 = scalar_lea.vmem %s7, 112
    %v1014 = vld [vmem:[%s1013] sm:$0xff]
    %v1015 = vld [vmem:[%s1013 + $0x8] sm:$0xff]
    %v1016 = vsel %vm196, %v1008, 0.0
    %1017 = vadd.xlane.f32.xlu0 %v1016
    %v1018 = vpop.xlane.xlu0 %1017
    %v1019 = vsel %vm196, %v1009, 0.0
    %1020 = vadd.xlane.f32.xlu0 %v1019
    %v1021 = vpop.xlane.xlu0 %1020
    %v1022 = vrcp.pop 32.0
    %v1023 = vmul.f32 %v1018, %v1022
    %v1024 = vmul.f32 %v1021, %v1022
    %v1025 = vsub.f32 %v1008, %v1023
    %v1026 = vsub.f32 %v1009, %v1024
    %v1027 = vmul.f32 %v1025, %v1025
    %v1028 = vmul.f32 %v1026, %v1026
    %v1029 = vsel %vm196, %v1027, 0.0
    %1030 = vadd.xlane.f32.xlu0 %v1029
    %v1031 = vpop.xlane.xlu0 %1030
    %v1032 = vsel %vm196, %v1028, 0.0
    %1033 = vadd.xlane.f32.xlu0 %v1032
    %v1034 = vpop.xlane.xlu0 %1033
    %v1035 = vmul.f32 %v1031, %v1022
    %v1036 = vmul.f32 %v1034, %v1022
    %v1037 = vadd.f32 %v1035, 1e-05
    %v1038 = vadd.f32 %v1036, 1e-05
    %v1039 = vrsqrt.pop %v1037
    %v1040 = vrsqrt.pop %v1038
    %v1041 = vmul.f32 %v1025, %v1039
    %v1042 = vmul.f32 %v1026, %v1040
    %v1043 = vmul.f32 %v1041, %v1011
    %v1044 = vmul.f32 %v1042, %v1012
    %v1045 = vadd.f32 %v1043, %v1014
    %v1046 = vadd.f32 %v1044, %v1015
    %v1047 = vld [vmem:[#allocation7] sm:$0xff]
    %v1048 = vld [vmem:[#allocation7 + $0x8] sm:$0xff]
    %v1049 = vld [vmem:[#allocation7 + $0x10] sm:$0xff]
    %v1050 = vld [vmem:[#allocation7 + $0x18] sm:$0xff]
    %v1051 = vld [vmem:[#allocation10] sm:$0xff]
    %v1052 = vld [vmem:[#allocation10 + $0x8] sm:$0xff]
    %v1054 = vsel %vm196, %v1045, 0
    %v1057 = vsel %vm196, %v1046, 0
    %1059 = vmatprep.subr.mxu0 0.0
    %1060 = vmatpush1.msra.mxu0 %v1047
    %1061 = vmatprep.subr.mxu0 0.0
    %1062 = vmatpush1.msra.mxu0 %v1048
    %1063 = vmatprep.subr.mxu0 0.0
    %1064 = vmatpush1.msra.mxu0 %v1049
    %1065 = vmatprep.subr.mxu0 0.0
    %1066 = vmatpush1.msra.mxu0 %v1050
    %1067 = vmatprep.subr.mxu0 0.0
    %1068 = vmatpush1.msra.mxu0 0.0
    %1069 = vmatprep.subr.mxu0 0.0
    %1070 = vmatpush1.msra.mxu0 0.0
    %1071 = vmatprep.subr.mxu0 0.0
    %1072 = vmatpush1.msra.mxu0 0.0
    %1073 = vmatprep.subr.mxu0 0.0
    %1074 = vmatpush1.msra.mxu0 0.0
    %1075 = vmatprep.subr.mxu0 0.0
    %1076 = vmatpush1.msra.mxu0 0.0
    %1077 = vmatprep.subr.mxu0 0.0
    %1078 = vmatpush1.msra.mxu0 0.0
    %1079 = vmatprep.subr.mxu0 0.0
    %1080 = vmatpush1.msra.mxu0 0.0
    %1081 = vmatprep.subr.mxu0 0.0
    %1082 = vmatpush1.msra.mxu0 0.0
    %1083 = vmatprep.subr.mxu0 0.0
    %1084 = vmatpush1.msra.mxu0 0.0
    %1085 = vmatprep.subr.mxu0 0.0
    %1086 = vmatpush1.msra.mxu0 0.0
    %1087 = vmatprep.subr.mxu0 0.0
    %1088 = vmatpush1.msra.mxu0 0.0
    %1089 = vmatprep.subr.mxu0 0.0
    %1090 = vmatpush1.msra.mxu0 0.0
    %1091 = vmatprep.subr.mxu0 0.0
    %1092 = vmatpush1.msra.mxu0 0.0
    %1093 = vmatprep.subr.mxu0 0.0
    %1094 = vmatpush1.msra.mxu0 0.0
    %1095 = vmatprep.subr.mxu0 0.0
    %1096 = vmatpush1.msra.mxu0 0.0
    %1097 = vmatprep.subr.mxu0 0.0
    %1098 = vmatpush1.msra.mxu0 0.0
    %1099 = vmatprep.subr.mxu0 0.0
    %1100 = vmatpush1.msra.mxu0 0.0
    %1101 = vmatprep.subr.mxu0 0.0
    %1102 = vmatpush1.msra.mxu0 0.0
    %1103 = vmatprep.subr.mxu0 0.0
    %1104 = vmatpush1.msra.mxu0 0.0
    %1105 = vmatprep.subr.mxu0 0.0
    %1106 = vmatpush1.msra.mxu0 0.0
    %1107 = vmatprep.subr.mxu0 0.0
    %1108 = vmatpush1.msra.mxu0 0.0
    %1109 = vmatprep.subr.mxu0 0.0
    %1110 = vmatpush1.msra.mxu0 0.0
    %1111 = vmatprep.subr.mxu0 0.0
    %1112 = vmatpush1.msra.mxu0 0.0
    %1113 = vmatprep.subr.mxu0 0.0
    %1114 = vmatpush1.msra.mxu0 0.0
    %1115 = vmatprep.subr.mxu0 0.0
    %1116 = vmatpush1.msra.mxu0 0.0
    %1117 = vmatprep.subr.mxu0 0.0
    %1118 = vmatpush1.msra.mxu0 0.0
    %1119 = vmatprep.subr.mxu0 0.0
    %1120 = vmatpush1.msra.mxu0 0.0
    %1121 = vmatprep.subr.mxu0 0.0
    %1122 = vmatpush1.msra.mxu0 0.0
    %1123 = vmatprep.mubr.f32.mxu0 0.0
    %1124 = vmatmul.mubr.f32.gmra.mrb[0].mxu0 %v1054
    %v1125 = vpop.f32.mrb[0].mxu0
    %v1126 = vadd.f32 %v1051, %v1125
    %v1127 = vpop.f32.mrb[0].mxu0
    %1128 = vmatprep.mubr.f32.mxu0 0.0
    %1129 = vmatmul.mubr.f32.gmra.mrb[0].mxu0 %v1057
    %v1130 = vpop.f32.mrb[0].mxu0
    %v1131 = vadd.f32 %v1052, %v1130
    %v1132 = vpop.f32.mrb[0].mxu0
    %1133 = vdwg.mxu0
    %v1134 = vmax.f32 %v1126, 0.0
    %v1135 = vmax.f32 %v1131, 0.0
    %v1136 = vld [vmem:[%s5] sm:$0xff]
    %v1137 = vld [vmem:[%s5 + $0x8] sm:$0xff]
    %v1138 = vld [vmem:[%s5 + $0x10] sm:$0xff]
    %v1139 = vld [vmem:[%s5 + $0x18] sm:$0xff]
    %v1140 = vld [vmem:[%s5 + $0x20] sm:$0xff]
    %v1141 = vld [vmem:[%s5 + $0x28] sm:$0xff]
    %v1142 = vld [vmem:[%s5 + $0x30] sm:$0xff]
    %v1143 = vld [vmem:[%s5 + $0x38] sm:$0xff]
    %s1144 = scalar_lea.vmem %s7, 160
    %v1145 = vld [vmem:[%s1144] sm:$0xff]
    %v1146 = vld [vmem:[%s1144 + $0x8] sm:$0xff]
    %v1148 = vsel %vm741, %v1134, 0
    %v1151 = vsel %vm741, %v1135, 0
    %1153 = vmatprep.subr.mxu0 0.0
    %1154 = vmatpush1.msra.mxu0 %v1136
    %1155 = vmatprep.subr.mxu0 0.0
    %1156 = vmatpush1.msra.mxu0 %v1137
    %1157 = vmatprep.subr.mxu0 0.0
    %1158 = vmatpush1.msra.mxu0 %v1138
    %1159 = vmatprep.subr.mxu0 0.0
    %1160 = vmatpush1.msra.mxu0 %v1139
    %1161 = vmatprep.subr.mxu0 0.0
    %1162 = vmatpush1.msra.mxu0 %v1140
    %1163 = vmatprep.subr.mxu0 0.0
    %1164 = vmatpush1.msra.mxu0 %v1141
    %1165 = vmatprep.subr.mxu0 0.0
    %1166 = vmatpush1.msra.mxu0 %v1142
    %1167 = vmatprep.subr.mxu0 0.0
    %1168 = vmatpush1.msra.mxu0 %v1143
    %1169 = vmatprep.subr.mxu0 0.0
    %1170 = vmatpush1.msra.mxu0 0.0
    %1171 = vmatprep.subr.mxu0 0.0
    %1172 = vmatpush1.msra.mxu0 0.0
    %1173 = vmatprep.subr.mxu0 0.0
    %1174 = vmatpush1.msra.mxu0 0.0
    %1175 = vmatprep.subr.mxu0 0.0
    %1176 = vmatpush1.msra.mxu0 0.0
    %1177 = vmatprep.subr.mxu0 0.0
    %1178 = vmatpush1.msra.mxu0 0.0
    %1179 = vmatprep.subr.mxu0 0.0
    %1180 = vmatpush1.msra.mxu0 0.0
    %1181 = vmatprep.subr.mxu0 0.0
    %1182 = vmatpush1.msra.mxu0 0.0
    %1183 = vmatprep.subr.mxu0 0.0
    %1184 = vmatpush1.msra.mxu0 0.0
    %1185 = vmatprep.subr.mxu0 0.0
    %1186 = vmatpush1.msra.mxu0 0.0
    %1187 = vmatprep.subr.mxu0 0.0
    %1188 = vmatpush1.msra.mxu0 0.0
    %1189 = vmatprep.subr.mxu0 0.0
    %1190 = vmatpush1.msra.mxu0 0.0
    %1191 = vmatprep.subr.mxu0 0.0
    %1192 = vmatpush1.msra.mxu0 0.0
    %1193 = vmatprep.subr.mxu0 0.0
    %1194 = vmatpush1.msra.mxu0 0.0
    %1195 = vmatprep.subr.mxu0 0.0
    %1196 = vmatpush1.msra.mxu0 0.0
    %1197 = vmatprep.subr.mxu0 0.0
    %1198 = vmatpush1.msra.mxu0 0.0
    %1199 = vmatprep.subr.mxu0 0.0
    %1200 = vmatpush1.msra.mxu0 0.0
    %1201 = vmatprep.subr.mxu0 0.0
    %1202 = vmatpush1.msra.mxu0 0.0
    %1203 = vmatprep.subr.mxu0 0.0
    %1204 = vmatpush1.msra.mxu0 0.0
    %1205 = vmatprep.subr.mxu0 0.0
    %1206 = vmatpush1.msra.mxu0 0.0
    %1207 = vmatprep.subr.mxu0 0.0
    %1208 = vmatpush1.msra.mxu0 0.0
    %1209 = vmatprep.subr.mxu0 0.0
    %1210 = vmatpush1.msra.mxu0 0.0
    %1211 = vmatprep.subr.mxu0 0.0
    %1212 = vmatpush1.msra.mxu0 0.0
    %1213 = vmatprep.subr.mxu0 0.0
    %1214 = vmatpush1.msra.mxu0 0.0
    %1215 = vmatprep.subr.mxu0 0.0
    %1216 = vmatpush1.msra.mxu0 0.0
    %1217 = vmatprep.mubr.f32.mxu0 0.0
    %1218 = vmatmul.mubr.f32.gmra.mrb[0].mxu0 %v1148
    %v1219 = vpop.f32.mrb[0].mxu0
    %v1220 = vadd.f32 %v1145, %v1219
    %v1221 = vpop.f32.mrb[0].mxu0
    %1222 = vmatprep.mubr.f32.mxu0 0.0
    %1223 = vmatmul.mubr.f32.gmra.mrb[0].mxu0 %v1151
    %v1224 = vpop.f32.mrb[0].mxu0
    %v1225 = vadd.f32 %v1146, %v1224
    %v1226 = vpop.f32.mrb[0].mxu0
    %1227 = vdwg.mxu0
    %v1228 = vadd.f32 %v1045, %v1220
    %v1229 = vadd.f32 %v1046, %v1225
    %s1230 = scalar_lea.vmem %s7, 128
    %v1231 = vld [vmem:[%s1230] sm:$0xff]
    %v1232 = vld [vmem:[%s1230 + $0x8] sm:$0xff]
    %s1233 = scalar_lea.vmem %s7, 144
    %v1234 = vld [vmem:[%s1233] sm:$0xff]
    %v1235 = vld [vmem:[%s1233 + $0x8] sm:$0xff]
    %v1236 = vsel %vm196, %v1228, 0.0
    %1237 = vadd.xlane.f32.xlu0 %v1236
    %v1238 = vpop.xlane.xlu0 %1237
    %v1239 = vsel %vm196, %v1229, 0.0
    %1240 = vadd.xlane.f32.xlu0 %v1239
    %v1241 = vpop.xlane.xlu0 %1240
    %v1242 = vmul.f32 %v1238, %v1022
    %v1243 = vmul.f32 %v1241, %v1022
    %v1244 = vsub.f32 %v1228, %v1242
    %v1245 = vsub.f32 %v1229, %v1243
    %v1246 = vmul.f32 %v1244, %v1244
    %v1247 = vmul.f32 %v1245, %v1245
    %v1248 = vsel %vm196, %v1246, 0.0
    %1249 = vadd.xlane.f32.xlu0 %v1248
    %v1250 = vpop.xlane.xlu0 %1249
    %v1251 = vsel %vm196, %v1247, 0.0
    %1252 = vadd.xlane.f32.xlu0 %v1251
    %v1253 = vpop.xlane.xlu0 %1252
    %v1254 = vmul.f32 %v1250, %v1022
    %v1255 = vmul.f32 %v1253, %v1022
    %v1256 = vadd.f32 %v1254, 1e-05
    %v1257 = vadd.f32 %v1255, 1e-05
    %v1258 = vrsqrt.pop %v1256
    %v1259 = vrsqrt.pop %v1257
    %v1260 = vmul.f32 %v1244, %v1258
    %v1261 = vmul.f32 %v1245, %v1259
    %v1262 = vmul.f32 %v1260, %v1231
    %v1263 = vmul.f32 %v1261, %v1232
    %v1264 = vadd.f32 %v1262, %v1234
    %v1265 = vadd.f32 %v1263, %v1235
    %s1266 = scalar_lea.vmem [#allocation4], 96
    %v1267 = vld [vmem:[%s1266] sm:$0xff]
    %v1268 = vld [vmem:[%s1266 + $0x8] sm:$0xff]
    %v1269 = vld [vmem:[%s1266 + $0x10] sm:$0xff]
    %v1270 = vld [vmem:[%s1266 + $0x18] sm:$0xff]
    %s1271 = scalar_lea.vmem %s7, 176
    %v1272 = vld [vmem:[%s1271] sm:$0xff]
    %v1273 = vld [vmem:[%s1271 + $0x8] sm:$0xff]
    %v1275 = vsel %vm196, %v1264, 0
    %v1278 = vsel %vm196, %v1265, 0
    %1280 = vmatprep.subr.mxu0 0.0
    %1281 = vmatpush1.msra.mxu0 %v1267
    %1282 = vmatprep.subr.mxu0 0.0
    %1283 = vmatpush1.msra.mxu0 %v1268
    %1284 = vmatprep.subr.mxu0 0.0
    %1285 = vmatpush1.msra.mxu0 %v1269
    %1286 = vmatprep.subr.mxu0 0.0
    %1287 = vmatpush1.msra.mxu0 %v1270
    %1288 = vmatprep.subr.mxu0 0.0
    %1289 = vmatpush1.msra.mxu0 0.0
    %1290 = vmatprep.subr.mxu0 0.0
    %1291 = vmatpush1.msra.mxu0 0.0
    %1292 = vmatprep.subr.mxu0 0.0
    %1293 = vmatpush1.msra.mxu0 0.0
    %1294 = vmatprep.subr.mxu0 0.0
    %1295 = vmatpush1.msra.mxu0 0.0
    %1296 = vmatprep.subr.mxu0 0.0
    %1297 = vmatpush1.msra.mxu0 0.0
    %1298 = vmatprep.subr.mxu0 0.0
    %1299 = vmatpush1.msra.mxu0 0.0
    %1300 = vmatprep.subr.mxu0 0.0
    %1301 = vmatpush1.msra.mxu0 0.0
    %1302 = vmatprep.subr.mxu0 0.0
    %1303 = vmatpush1.msra.mxu0 0.0
    %1304 = vmatprep.subr.mxu0 0.0
    %1305 = vmatpush1.msra.mxu0 0.0
    %1306 = vmatprep.subr.mxu0 0.0
    %1307 = vmatpush1.msra.mxu0 0.0
    %1308 = vmatprep.subr.mxu0 0.0
    %1309 = vmatpush1.msra.mxu0 0.0
    %1310 = vmatprep.subr.mxu0 0.0
    %1311 = vmatpush1.msra.mxu0 0.0
    %1312 = vmatprep.subr.mxu0 0.0
    %1313 = vmatpush1.msra.mxu0 0.0
    %1314 = vmatprep.subr.mxu0 0.0
    %1315 = vmatpush1.msra.mxu0 0.0
    %1316 = vmatprep.subr.mxu0 0.0
    %1317 = vmatpush1.msra.mxu0 0.0
    %1318 = vmatprep.subr.mxu0 0.0
    %1319 = vmatpush1.msra.mxu0 0.0
    %1320 = vmatprep.subr.mxu0 0.0
    %1321 = vmatpush1.msra.mxu0 0.0
    %1322 = vmatprep.subr.mxu0 0.0
    %1323 = vmatpush1.msra.mxu0 0.0
    %1324 = vmatprep.subr.mxu0 0.0
    %1325 = vmatpush1.msra.mxu0 0.0
    %1326 = vmatprep.subr.mxu0 0.0
    %1327 = vmatpush1.msra.mxu0 0.0
    %1328 = vmatprep.subr.mxu0 0.0
    %1329 = vmatpush1.msra.mxu0 0.0
    %1330 = vmatprep.subr.mxu0 0.0
    %1331 = vmatpush1.msra.mxu0 0.0
    %1332 = vmatprep.subr.mxu0 0.0
    %1333 = vmatpush1.msra.mxu0 0.0
    %1334 = vmatprep.subr.mxu0 0.0
    %1335 = vmatpush1.msra.mxu0 0.0
    %1336 = vmatprep.subr.mxu0 0.0
    %1337 = vmatpush1.msra.mxu0 0.0
    %1338 = vmatprep.subr.mxu0 0.0
    %1339 = vmatpush1.msra.mxu0 0.0
    %1340 = vmatprep.subr.mxu0 0.0
    %1341 = vmatpush1.msra.mxu0 0.0
    %1342 = vmatprep.subr.mxu0 0.0
    %1343 = vmatpush1.msra.mxu0 0.0
    %1344 = vmatprep.mubr.f32.mxu0 0.0
    %1345 = vmatmul.mubr.f32.gmra.mrb[0].mxu0 %v1275
    %v1346 = vpop.f32.mrb[0].mxu0
    %v1347 = vadd.f32 %v1272, %v1346
    %v1348 = vpop.f32.mrb[0].mxu0
    %1349 = vmatprep.mubr.f32.mxu0 0.0
    %1350 = vmatmul.mubr.f32.gmra.mrb[0].mxu0 %v1278
    %v1351 = vpop.f32.mrb[0].mxu0
    %v1352 = vadd.f32 %v1273, %v1351
    %v1353 = vpop.f32.mrb[0].mxu0
    %1354 = vdwg.mxu0
    %s1355 = scalar_lea.vmem [#allocation4], 128
    %v1356 = vld [vmem:[%s1355] sm:$0xff]
    %v1357 = vld [vmem:[%s1355 + $0x8] sm:$0xff]
    %v1358 = vld [vmem:[%s1355 + $0x10] sm:$0xff]
    %v1359 = vld [vmem:[%s1355 + $0x18] sm:$0xff]
    %s1360 = scalar_lea.vmem %s7, 192
    %v1361 = vld [vmem:[%s1360] sm:$0xff]
    %v1362 = vld [vmem:[%s1360 + $0x8] sm:$0xff]
    %1363 = vmatprep.subr.mxu0 0.0
    %1364 = vmatpush1.msra.mxu0 %v1356
    %1365 = vmatprep.subr.mxu0 0.0
    %1366 = vmatpush1.msra.mxu0 %v1357
    %1367 = vmatprep.subr.mxu0 0.0
    %1368 = vmatpush1.msra.mxu0 %v1358
    %1369 = vmatprep.subr.mxu0 0.0
    %1370 = vmatpush1.msra.mxu0 %v1359
    %1371 = vmatprep.subr.mxu0 0.0
    %1372 = vmatpush1.msra.mxu0 0.0
    %1373 = vmatprep.subr.mxu0 0.0
    %1374 = vmatpush1.msra.mxu0 0.0
    %1375 = vmatprep.subr.mxu0 0.0
    %1376 = vmatpush1.msra.mxu0 0.0
    %1377 = vmatprep.subr.mxu0 0.0
    %1378 = vmatpush1.msra.mxu0 0.0
    %1379 = vmatprep.subr.mxu0 0.0
    %1380 = vmatpush1.msra.mxu0 0.0
    %1381 = vmatprep.subr.mxu0 0.0
    %1382 = vmatpush1.msra.mxu0 0.0
    %1383 = vmatprep.subr.mxu0 0.0
    %1384 = vmatpush1.msra.mxu0 0.0
    %1385 = vmatprep.subr.mxu0 0.0
    %1386 = vmatpush1.msra.mxu0 0.0
    %1387 = vmatprep.subr.mxu0 0.0
    %1388 = vmatpush1.msra.mxu0 0.0
    %1389 = vmatprep.subr.mxu0 0.0
    %1390 = vmatpush1.msra.mxu0 0.0
    %1391 = vmatprep.subr.mxu0 0.0
    %1392 = vmatpush1.msra.mxu0 0.0
    %1393 = vmatprep.subr.mxu0 0.0
    %1394 = vmatpush1.msra.mxu0 0.0
    %1395 = vmatprep.subr.mxu0 0.0
    %1396 = vmatpush1.msra.mxu0 0.0
    %1397 = vmatprep.subr.mxu0 0.0
    %1398 = vmatpush1.msra.mxu0 0.0
    %1399 = vmatprep.subr.mxu0 0.0
    %1400 = vmatpush1.msra.mxu0 0.0
    %1401 = vmatprep.subr.mxu0 0.0
    %1402 = vmatpush1.msra.mxu0 0.0
    %1403 = vmatprep.subr.mxu0 0.0
    %1404 = vmatpush1.msra.mxu0 0.0
    %1405 = vmatprep.subr.mxu0 0.0
    %1406 = vmatpush1.msra.mxu0 0.0
    %1407 = vmatprep.subr.mxu0 0.0
    %1408 = vmatpush1.msra.mxu0 0.0
    %1409 = vmatprep.subr.mxu0 0.0
    %1410 = vmatpush1.msra.mxu0 0.0
    %1411 = vmatprep.subr.mxu0 0.0
    %1412 = vmatpush1.msra.mxu0 0.0
    %1413 = vmatprep.subr.mxu0 0.0
    %1414 = vmatpush1.msra.mxu0 0.0
    %1415 = vmatprep.subr.mxu0 0.0
    %1416 = vmatpush1.msra.mxu0 0.0
    %1417 = vmatprep.subr.mxu0 0.0
    %1418 = vmatpush1.msra.mxu0 0.0
    %1419 = vmatprep.subr.mxu0 0.0
    %1420 = vmatpush1.msra.mxu0 0.0
    %1421 = vmatprep.subr.mxu0 0.0
    %1422 = vmatpush1.msra.mxu0 0.0
    %1423 = vmatprep.subr.mxu0 0.0
    %1424 = vmatpush1.msra.mxu0 0.0
    %1425 = vmatprep.subr.mxu0 0.0
    %1426 = vmatpush1.msra.mxu0 0.0
    %1427 = vmatprep.mubr.f32.mxu0 0.0
    %1428 = vmatmul.mubr.f32.gmra.mrb[0].mxu0 %v1275
    %v1429 = vpop.f32.mrb[0].mxu0
    %v1430 = vadd.f32 %v1361, %v1429
    %v1431 = vpop.f32.mrb[0].mxu0
    %1432 = vmatprep.mubr.f32.mxu0 0.0
    %1433 = vmatmul.mubr.f32.gmra.mrb[0].mxu0 %v1278
    %v1434 = vpop.f32.mrb[0].mxu0
    %v1435 = vadd.f32 %v1362, %v1434
    %v1436 = vpop.f32.mrb[0].mxu0
    %1437 = vdwg.mxu0
    %s1438 = scalar_lea.vmem [#allocation4], 160
    %v1439 = vld [vmem:[%s1438] sm:$0xff]
    %v1440 = vld [vmem:[%s1438 + $0x8] sm:$0xff]
    %v1441 = vld [vmem:[%s1438 + $0x10] sm:$0xff]
    %v1442 = vld [vmem:[%s1438 + $0x18] sm:$0xff]
    %s1443 = scalar_lea.vmem %s7, 208
    %v1444 = vld [vmem:[%s1443] sm:$0xff]
    %v1445 = vld [vmem:[%s1443 + $0x8] sm:$0xff]
    %1446 = vmatprep.subr.mxu0 0.0
    %1447 = vmatpush1.msra.mxu0 %v1439
    %1448 = vmatprep.subr.mxu0 0.0
    %1449 = vmatpush1.msra.mxu0 %v1440
    %1450 = vmatprep.subr.mxu0 0.0
    %1451 = vmatpush1.msra.mxu0 %v1441
    %1452 = vmatprep.subr.mxu0 0.0
    %1453 = vmatpush1.msra.mxu0 %v1442
    %1454 = vmatprep.subr.mxu0 0.0
    %1455 = vmatpush1.msra.mxu0 0.0
    %1456 = vmatprep.subr.mxu0 0.0
    %1457 = vmatpush1.msra.mxu0 0.0
    %1458 = vmatprep.subr.mxu0 0.0
    %1459 = vmatpush1.msra.mxu0 0.0
    %1460 = vmatprep.subr.mxu0 0.0
    %1461 = vmatpush1.msra.mxu0 0.0
    %1462 = vmatprep.subr.mxu0 0.0
    %1463 = vmatpush1.msra.mxu0 0.0
    %1464 = vmatprep.subr.mxu0 0.0
    %1465 = vmatpush1.msra.mxu0 0.0
    %1466 = vmatprep.subr.mxu0 0.0
    %1467 = vmatpush1.msra.mxu0 0.0
    %1468 = vmatprep.subr.mxu0 0.0
    %1469 = vmatpush1.msra.mxu0 0.0
    %1470 = vmatprep.subr.mxu0 0.0
    %1471 = vmatpush1.msra.mxu0 0.0
    %1472 = vmatprep.subr.mxu0 0.0
    %1473 = vmatpush1.msra.mxu0 0.0
    %1474 = vmatprep.subr.mxu0 0.0
    %1475 = vmatpush1.msra.mxu0 0.0
    %1476 = vmatprep.subr.mxu0 0.0
    %1477 = vmatpush1.msra.mxu0 0.0
    %1478 = vmatprep.subr.mxu0 0.0
    %1479 = vmatpush1.msra.mxu0 0.0
    %1480 = vmatprep.subr.mxu0 0.0
    %1481 = vmatpush1.msra.mxu0 0.0
    %1482 = vmatprep.subr.mxu0 0.0
    %1483 = vmatpush1.msra.mxu0 0.0
    %1484 = vmatprep.subr.mxu0 0.0
    %1485 = vmatpush1.msra.mxu0 0.0
    %1486 = vmatprep.subr.mxu0 0.0
    %1487 = vmatpush1.msra.mxu0 0.0
    %1488 = vmatprep.subr.mxu0 0.0
    %1489 = vmatpush1.msra.mxu0 0.0
    %1490 = vmatprep.subr.mxu0 0.0
    %1491 = vmatpush1.msra.mxu0 0.0
    %1492 = vmatprep.subr.mxu0 0.0
    %1493 = vmatpush1.msra.mxu0 0.0
    %1494 = vmatprep.subr.mxu0 0.0
    %1495 = vmatpush1.msra.mxu0 0.0
    %1496 = vmatprep.subr.mxu0 0.0
    %1497 = vmatpush1.msra.mxu0 0.0
    %1498 = vmatprep.subr.mxu0 0.0
    %1499 = vmatpush1.msra.mxu0 0.0
    %1500 = vmatprep.subr.mxu0 0.0
    %1501 = vmatpush1.msra.mxu0 0.0
    %1502 = vmatprep.subr.mxu0 0.0
    %1503 = vmatpush1.msra.mxu0 0.0
    %1504 = vmatprep.subr.mxu0 0.0
    %1505 = vmatpush1.msra.mxu0 0.0
    %1506 = vmatprep.subr.mxu0 0.0
    %1507 = vmatpush1.msra.mxu0 0.0
    %1508 = vmatprep.subr.mxu0 0.0
    %1509 = vmatpush1.msra.mxu0 0.0
    %1510 = vmatprep.mubr.f32.mxu0 0.0
    %1511 = vmatmul.mubr.f32.gmra.mrb[0].mxu0 %v1275
    %v1512 = vpop.f32.mrb[0].mxu0
    %v1513 = vadd.f32 %v1444, %v1512
    %v1514 = vpop.f32.mrb[0].mxu0
    %1515 = vmatprep.mubr.f32.mxu0 0.0
    %1516 = vmatmul.mubr.f32.gmra.mrb[0].mxu0 %v1278
    %v1517 = vpop.f32.mrb[0].mxu0
    %v1518 = vadd.f32 %v1445, %v1517
    %v1519 = vpop.f32.mrb[0].mxu0
    %1520 = vdwg.mxu0
    %v1521 = vmul.f32 %v1430, %v168
    %v1522 = vmul.f32 %v1435, %v169
    %v1523 = vmul.f32 %v1430, %v170
    %v1524 = vmul.f32 %v1435, %v171
    %v1525 = vmul.f32 %v1430, %v172
    %v1526 = vmul.f32 %v1435, %v173
    %v1527 = vmul.f32 %v1430, %v174
    %v1528 = vmul.f32 %v1435, %v175
    %v1529 = vmul.f32 %v1513, %v168
    %v1530 = vmul.f32 %v1518, %v169
    %v1531 = vmul.f32 %v1513, %v170
    %v1532 = vmul.f32 %v1518, %v171
    %v1533 = vmul.f32 %v1513, %v172
    %v1534 = vmul.f32 %v1518, %v173
    %v1535 = vmul.f32 %v1513, %v174
    %v1536 = vmul.f32 %v1518, %v175
    %v1538 = vsel %vm196, %v1347, 0
    %v1541 = vsel %vm196, %v1352, 0
    %v1544 = vsel %vm196, %v1521, 0
    %v1547 = vsel %vm196, %v1522, 0
    %v1550 = vsel %vm196, %v1523, 0
    %v1553 = vsel %vm196, %v1524, 0
    %v1556 = vsel %vm196, %v1525, 0
    %v1559 = vsel %vm196, %v1526, 0
    %v1562 = vsel %vm196, %v1527, 0
    %v1565 = vsel %vm196, %v1528, 0
    %1567 = vmatprep.subr.mxu0 0.0
    %1568 = vmatpush1.xpose.msra.mxu0 %v1544
    %1569 = vmatprep.subr.mxu0 0.0
    %1570 = vmatpush1.xpose.msra.mxu0 %v1547
    %1571 = vmatprep.subr.mxu0 0.0
    %1572 = vmatpush1.xpose.msra.mxu0 %v1550
    %1573 = vmatprep.subr.mxu0 0.0
    %1574 = vmatpush1.xpose.msra.mxu0 %v1553
    %1575 = vmatprep.subr.mxu0 0.0
    %1576 = vmatpush1.xpose.msra.mxu0 %v1556
    %1577 = vmatprep.subr.mxu0 0.0
    %1578 = vmatpush1.xpose.msra.mxu0 %v1559
    %1579 = vmatprep.subr.mxu0 0.0
    %1580 = vmatpush1.xpose.msra.mxu0 %v1562
    %1581 = vmatprep.subr.mxu0 0.0
    %1582 = vmatpush1.xpose.msra.mxu0 %v1565
    %1583 = vmatprep.subr.mxu0 0.0
    %1584 = vmatpush1.xpose.msra.mxu0 0.0
    %1585 = vmatprep.subr.mxu0 0.0
    %1586 = vmatpush1.xpose.msra.mxu0 0.0
    %1587 = vmatprep.subr.mxu0 0.0
    %1588 = vmatpush1.xpose.msra.mxu0 0.0
    %1589 = vmatprep.subr.mxu0 0.0
    %1590 = vmatpush1.xpose.msra.mxu0 0.0
    %1591 = vmatprep.subr.mxu0 0.0
    %1592 = vmatpush1.xpose.msra.mxu0 0.0
    %1593 = vmatprep.subr.mxu0 0.0
    %1594 = vmatpush1.xpose.msra.mxu0 0.0
    %1595 = vmatprep.subr.mxu0 0.0
    %1596 = vmatpush1.xpose.msra.mxu0 0.0
    %1597 = vmatprep.subr.mxu0 0.0
    %1598 = vmatpush1.xpose.msra.mxu0 0.0
    %1599 = vmatprep.subr.mxu0 0.0
    %1600 = vmatpush1.xpose.msra.mxu0 0.0
    %1601 = vmatprep.subr.mxu0 0.0
    %1602 = vmatpush1.xpose.msra.mxu0 0.0
    %1603 = vmatprep.subr.mxu0 0.0
    %1604 = vmatpush1.xpose.msra.mxu0 0.0
    %1605 = vmatprep.subr.mxu0 0.0
    %1606 = vmatpush1.xpose.msra.mxu0 0.0
    %1607 = vmatprep.subr.mxu0 0.0
    %1608 = vmatpush1.xpose.msra.mxu0 0.0
    %1609 = vmatprep.subr.mxu0 0.0
    %1610 = vmatpush1.xpose.msra.mxu0 0.0
    %1611 = vmatprep.subr.mxu0 0.0
    %1612 = vmatpush1.xpose.msra.mxu0 0.0
    %1613 = vmatprep.subr.mxu0 0.0
    %1614 = vmatpush1.xpose.msra.mxu0 0.0
    %1615 = vmatprep.subr.mxu0 0.0
    %1616 = vmatpush1.xpose.msra.mxu0 0.0
    %1617 = vmatprep.subr.mxu0 0.0
    %1618 = vmatpush1.xpose.msra.mxu0 0.0
    %1619 = vmatprep.subr.mxu0 0.0
    %1620 = vmatpush1.xpose.msra.mxu0 0.0
    %1621 = vmatprep.subr.mxu0 0.0
    %1622 = vmatpush1.xpose.msra.mxu0 0.0
    %1623 = vmatprep.subr.mxu0 0.0
    %1624 = vmatpush1.xpose.msra.mxu0 0.0
    %1625 = vmatprep.subr.mxu0 0.0
    %1626 = vmatpush1.xpose.msra.mxu0 0.0
    %1627 = vmatprep.subr.mxu0 0.0
    %1628 = vmatpush1.xpose.msra.mxu0 0.0
    %1629 = vmatprep.subr.mxu0 0.0
    %1630 = vmatpush1.xpose.msra.mxu0 0.0
    %1631 = vmatprep.mubr.f32.mxu0 0.0
    %1632 = vmatmul.mubr.f32.gmra.mrb[0].mxu0 %v1538
    %v1633 = vpop.f32.mrb[0].mxu0
    %v1634 = vadd.f32 %v184, %v1633
    %v1635 = vpop.f32.mrb[0].mxu0
    %1636 = vmatprep.mubr.f32.mxu0 0.0
    %1637 = vmatmul.mubr.f32.gmra.mrb[0].mxu0 %v1541
    %v1638 = vpop.f32.mrb[0].mxu0
    %v1639 = vadd.f32 %v185, %v1638
    %v1640 = vpop.f32.mrb[0].mxu0
    %1641 = vdwg.mxu0
    %v1642 = vsel %vm741, %v1634, -inf
    %1643 = vmax.xlane.f32.xlu0 %v1642
    %v1644 = vpop.xlane.xlu0 %1643
    %v1645 = vsel %vm741, %v1639, -inf
    %1646 = vmax.xlane.f32.xlu0 %v1645
    %v1647 = vpop.xlane.xlu0 %1646
    %v1648 = vsub.f32 %v1634, %v1644
    %v1649 = vsub.f32 %v1639, %v1647
    %v1650 = vmul.f32 %v1648, 1.442695
    %v1651 = vpow.pop %v1650
    %v1652 = vmul.f32 %v1649, 1.442695
    %v1653 = vpow.pop %v1652
    %v1655 = vsel %vm741, %v1651, 0
    %v1658 = vsel %vm741, %v1653, 0
    %1660 = vmatprep.subr.mxu0 0.0
    %1661 = vmatpush1.msra.mxu0 %v176
    %1662 = vmatprep.subr.mxu0 0.0
    %1663 = vmatpush1.msra.mxu0 %v177
    %1664 = vmatprep.subr.mxu0 0.0
    %1665 = vmatpush1.msra.mxu0 %v178
    %1666 = vmatprep.subr.mxu0 0.0
    %1667 = vmatpush1.msra.mxu0 %v179
    %1668 = vmatprep.subr.mxu0 0.0
    %1669 = vmatpush1.msra.mxu0 %v180
    %1670 = vmatprep.subr.mxu0 0.0
    %1671 = vmatpush1.msra.mxu0 %v181
    %1672 = vmatprep.subr.mxu0 0.0
    %1673 = vmatpush1.msra.mxu0 %v182
    %1674 = vmatprep.subr.mxu0 0.0
    %1675 = vmatpush1.msra.mxu0 %v183
    %1676 = vmatprep.subr.mxu0 0.0
    %1677 = vmatpush1.msra.mxu0 0.0
    %1678 = vmatprep.subr.mxu0 0.0
    %1679 = vmatpush1.msra.mxu0 0.0
    %1680 = vmatprep.subr.mxu0 0.0
    %1681 = vmatpush1.msra.mxu0 0.0
    %1682 = vmatprep.subr.mxu0 0.0
    %1683 = vmatpush1.msra.mxu0 0.0
    %1684 = vmatprep.subr.mxu0 0.0
    %1685 = vmatpush1.msra.mxu0 0.0
    %1686 = vmatprep.subr.mxu0 0.0
    %1687 = vmatpush1.msra.mxu0 0.0
    %1688 = vmatprep.subr.mxu0 0.0
    %1689 = vmatpush1.msra.mxu0 0.0
    %1690 = vmatprep.subr.mxu0 0.0
    %1691 = vmatpush1.msra.mxu0 0.0
    %1692 = vmatprep.subr.mxu0 0.0
    %1693 = vmatpush1.msra.mxu0 0.0
    %1694 = vmatprep.subr.mxu0 0.0
    %1695 = vmatpush1.msra.mxu0 0.0
    %1696 = vmatprep.subr.mxu0 0.0
    %1697 = vmatpush1.msra.mxu0 0.0
    %1698 = vmatprep.subr.mxu0 0.0
    %1699 = vmatpush1.msra.mxu0 0.0
    %1700 = vmatprep.subr.mxu0 0.0
    %1701 = vmatpush1.msra.mxu0 0.0
    %1702 = vmatprep.subr.mxu0 0.0
    %1703 = vmatpush1.msra.mxu0 0.0
    %1704 = vmatprep.subr.mxu0 0.0
    %1705 = vmatpush1.msra.mxu0 0.0
    %1706 = vmatprep.subr.mxu0 0.0
    %1707 = vmatpush1.msra.mxu0 0.0
    %1708 = vmatprep.subr.mxu0 0.0
    %1709 = vmatpush1.msra.mxu0 0.0
    %1710 = vmatprep.subr.mxu0 0.0
    %1711 = vmatpush1.msra.mxu0 0.0
    %1712 = vmatprep.subr.mxu0 0.0
    %1713 = vmatpush1.msra.mxu0 0.0
    %1714 = vmatprep.subr.mxu0 0.0
    %1715 = vmatpush1.msra.mxu0 0.0
    %1716 = vmatprep.subr.mxu0 0.0
    %1717 = vmatpush1.msra.mxu0 0.0
    %1718 = vmatprep.subr.mxu0 0.0
    %1719 = vmatpush1.msra.mxu0 0.0
    %1720 = vmatprep.subr.mxu0 0.0
    %1721 = vmatpush1.msra.mxu0 0.0
    %1722 = vmatprep.subr.mxu0 0.0
    %1723 = vmatpush1.msra.mxu0 0.0
    %1724 = vmatprep.mubr.f32.mxu0 0.0
    %1725 = vmatmul.mubr.f32.gmra.mrb[0].mxu0 %v1655
    %v1726 = vpop.f32.mrb[0].mxu0
    %v1727 = vadd.f32 1e-20, %v1726
    %v1728 = vpop.f32.mrb[0].mxu0
    %1729 = vmatprep.mubr.f32.mxu0 0.0
    %1730 = vmatmul.mubr.f32.gmra.mrb[0].mxu0 %v1658
    %v1731 = vpop.f32.mrb[0].mxu0
    %v1732 = vadd.f32 1e-20, %v1731
    %v1733 = vpop.f32.mrb[0].mxu0
    %1734 = vdwg.mxu0
    %v1735 = vrcp.pop %v1727
    %v1736 = vrcp.pop %v1732
    %v1737 = vmul.f32 %v1651, %v1735
    %v1738 = vmul.f32 %v1653, %v1736
    %v1740 = vsel %vm741, %v1737, 0
    %v1743 = vsel %vm741, %v1738, 0
    %1745 = vmatprep.subr.mxu0 0.0
    %1746 = vmatpush1.msra.mxu0 %v1529
    %1747 = vmatprep.subr.mxu0 0.0
    %1748 = vmatpush1.msra.mxu0 %v1530
    %1749 = vmatprep.subr.mxu0 0.0
    %1750 = vmatpush1.msra.mxu0 %v1531
    %1751 = vmatprep.subr.mxu0 0.0
    %1752 = vmatpush1.msra.mxu0 %v1532
    %1753 = vmatprep.subr.mxu0 0.0
    %1754 = vmatpush1.msra.mxu0 %v1533
    %1755 = vmatprep.subr.mxu0 0.0
    %1756 = vmatpush1.msra.mxu0 %v1534
    %1757 = vmatprep.subr.mxu0 0.0
    %1758 = vmatpush1.msra.mxu0 %v1535
    %1759 = vmatprep.subr.mxu0 0.0
    %1760 = vmatpush1.msra.mxu0 %v1536
    %1761 = vmatprep.subr.mxu0 0.0
    %1762 = vmatpush1.msra.mxu0 0.0
    %1763 = vmatprep.subr.mxu0 0.0
    %1764 = vmatpush1.msra.mxu0 0.0
    %1765 = vmatprep.subr.mxu0 0.0
    %1766 = vmatpush1.msra.mxu0 0.0
    %1767 = vmatprep.subr.mxu0 0.0
    %1768 = vmatpush1.msra.mxu0 0.0
    %1769 = vmatprep.subr.mxu0 0.0
    %1770 = vmatpush1.msra.mxu0 0.0
    %1771 = vmatprep.subr.mxu0 0.0
    %1772 = vmatpush1.msra.mxu0 0.0
    %1773 = vmatprep.subr.mxu0 0.0
    %1774 = vmatpush1.msra.mxu0 0.0
    %1775 = vmatprep.subr.mxu0 0.0
    %1776 = vmatpush1.msra.mxu0 0.0
    %1777 = vmatprep.subr.mxu0 0.0
    %1778 = vmatpush1.msra.mxu0 0.0
    %1779 = vmatprep.subr.mxu0 0.0
    %1780 = vmatpush1.msra.mxu0 0.0
    %1781 = vmatprep.subr.mxu0 0.0
    %1782 = vmatpush1.msra.mxu0 0.0
    %1783 = vmatprep.subr.mxu0 0.0
    %1784 = vmatpush1.msra.mxu0 0.0
    %1785 = vmatprep.subr.mxu0 0.0
    %1786 = vmatpush1.msra.mxu0 0.0
    %1787 = vmatprep.subr.mxu0 0.0
    %1788 = vmatpush1.msra.mxu0 0.0
    %1789 = vmatprep.subr.mxu0 0.0
    %1790 = vmatpush1.msra.mxu0 0.0
    %1791 = vmatprep.subr.mxu0 0.0
    %1792 = vmatpush1.msra.mxu0 0.0
    %1793 = vmatprep.subr.mxu0 0.0
    %1794 = vmatpush1.msra.mxu0 0.0
    %1795 = vmatprep.subr.mxu0 0.0
    %1796 = vmatpush1.msra.mxu0 0.0
    %1797 = vmatprep.subr.mxu0 0.0
    %1798 = vmatpush1.msra.mxu0 0.0
    %1799 = vmatprep.subr.mxu0 0.0
    %1800 = vmatpush1.msra.mxu0 0.0
    %1801 = vmatprep.subr.mxu0 0.0
    %1802 = vmatpush1.msra.mxu0 0.0
    %1803 = vmatprep.subr.mxu0 0.0
    %1804 = vmatpush1.msra.mxu0 0.0
    %1805 = vmatprep.subr.mxu0 0.0
    %1806 = vmatpush1.msra.mxu0 0.0
    %1807 = vmatprep.subr.mxu0 0.0
    %1808 = vmatpush1.msra.mxu0 0.0
    %1809 = vmatprep.mubr.f32.mxu0 0.0
    %1810 = vmatmul.mubr.f32.gmra.mrb[0].mxu0 %v1740
    %v1811 = vpop.f32.mrb[0].mxu0
    %v1812 = vadd.f32 0.0, %v1811
    %v1813 = vpop.f32.mrb[0].mxu0
    %1814 = vmatprep.mubr.f32.mxu0 0.0
    %1815 = vmatmul.mubr.f32.gmra.mrb[0].mxu0 %v1743
    %v1816 = vpop.f32.mrb[0].mxu0
    %v1817 = vadd.f32 0.0, %v1816
    %v1818 = vpop.f32.mrb[0].mxu0
    %1819 = vdwg.mxu0
    %s1820 = scalar_lea.vmem [#allocation6], 32
    %v1821 = vld [vmem:[%s1820] sm:$0xff]
    %v1822 = vld [vmem:[%s1820 + $0x8] sm:$0xff]
    %v1823 = vld [vmem:[%s1820 + $0x10] sm:$0xff]
    %v1824 = vld [vmem:[%s1820 + $0x18] sm:$0xff]
    %s1825 = scalar_lea.vmem %s7, 224
    %v1826 = vld [vmem:[%s1825] sm:$0xff]
    %v1827 = vld [vmem:[%s1825 + $0x8] sm:$0xff]
    %v1829 = vsel %vm196, %v1812, 0
    %v1832 = vsel %vm196, %v1817, 0
    %1834 = vmatprep.subr.mxu0 0.0
    %1835 = vmatpush1.msra.mxu0 %v1821
    %1836 = vmatprep.subr.mxu0 0.0
    %1837 = vmatpush1.msra.mxu0 %v1822
    %1838 = vmatprep.subr.mxu0 0.0
    %1839 = vmatpush1.msra.mxu0 %v1823
    %1840 = vmatprep.subr.mxu0 0.0
    %1841 = vmatpush1.msra.mxu0 %v1824
    %1842 = vmatprep.subr.mxu0 0.0
    %1843 = vmatpush1.msra.mxu0 0.0
    %1844 = vmatprep.subr.mxu0 0.0
    %1845 = vmatpush1.msra.mxu0 0.0
    %1846 = vmatprep.subr.mxu0 0.0
    %1847 = vmatpush1.msra.mxu0 0.0
    %1848 = vmatprep.subr.mxu0 0.0
    %1849 = vmatpush1.msra.mxu0 0.0
    %1850 = vmatprep.subr.mxu0 0.0
    %1851 = vmatpush1.msra.mxu0 0.0
    %1852 = vmatprep.subr.mxu0 0.0
    %1853 = vmatpush1.msra.mxu0 0.0
    %1854 = vmatprep.subr.mxu0 0.0
    %1855 = vmatpush1.msra.mxu0 0.0
    %1856 = vmatprep.subr.mxu0 0.0
    %1857 = vmatpush1.msra.mxu0 0.0
    %1858 = vmatprep.subr.mxu0 0.0
    %1859 = vmatpush1.msra.mxu0 0.0
    %1860 = vmatprep.subr.mxu0 0.0
    %1861 = vmatpush1.msra.mxu0 0.0
    %1862 = vmatprep.subr.mxu0 0.0
    %1863 = vmatpush1.msra.mxu0 0.0
    %1864 = vmatprep.subr.mxu0 0.0
    %1865 = vmatpush1.msra.mxu0 0.0
    %1866 = vmatprep.subr.mxu0 0.0
    %1867 = vmatpush1.msra.mxu0 0.0
    %1868 = vmatprep.subr.mxu0 0.0
    %1869 = vmatpush1.msra.mxu0 0.0
    %1870 = vmatprep.subr.mxu0 0.0
    %1871 = vmatpush1.msra.mxu0 0.0
    %1872 = vmatprep.subr.mxu0 0.0
    %1873 = vmatpush1.msra.mxu0 0.0
    %1874 = vmatprep.subr.mxu0 0.0
    %1875 = vmatpush1.msra.mxu0 0.0
    %1876 = vmatprep.subr.mxu0 0.0
    %1877 = vmatpush1.msra.mxu0 0.0
    %1878 = vmatprep.subr.mxu0 0.0
    %1879 = vmatpush1.msra.mxu0 0.0
    %1880 = vmatprep.subr.mxu0 0.0
    %1881 = vmatpush1.msra.mxu0 0.0
    %1882 = vmatprep.subr.mxu0 0.0
    %1883 = vmatpush1.msra.mxu0 0.0
    %1884 = vmatprep.subr.mxu0 0.0
    %1885 = vmatpush1.msra.mxu0 0.0
    %1886 = vmatprep.subr.mxu0 0.0
    %1887 = vmatpush1.msra.mxu0 0.0
    %1888 = vmatprep.subr.mxu0 0.0
    %1889 = vmatpush1.msra.mxu0 0.0
    %1890 = vmatprep.subr.mxu0 0.0
    %1891 = vmatpush1.msra.mxu0 0.0
    %1892 = vmatprep.subr.mxu0 0.0
    %1893 = vmatpush1.msra.mxu0 0.0
    %1894 = vmatprep.subr.mxu0 0.0
    %1895 = vmatpush1.msra.mxu0 0.0
    %1896 = vmatprep.subr.mxu0 0.0
    %1897 = vmatpush1.msra.mxu0 0.0
    %1898 = vmatprep.mubr.f32.mxu0 0.0
    %1899 = vmatmul.mubr.f32.gmra.mrb[0].mxu0 %v1829
    %v1900 = vpop.f32.mrb[0].mxu0
    %v1901 = vadd.f32 %v1826, %v1900
    %v1902 = vpop.f32.mrb[0].mxu0
    %1903 = vmatprep.mubr.f32.mxu0 0.0
    %1904 = vmatmul.mubr.f32.gmra.mrb[0].mxu0 %v1832
    %v1905 = vpop.f32.mrb[0].mxu0
    %v1906 = vadd.f32 %v1827, %v1905
    %v1907 = vpop.f32.mrb[0].mxu0
    %1908 = vdwg.mxu0
    %v1909 = vadd.f32 %v1264, %v1901
    %v1910 = vadd.f32 %v1265, %v1906
    %s1911 = scalar_lea.vmem %s7, 240
    %v1912 = vld [vmem:[%s1911] sm:$0xff]
    %v1913 = vld [vmem:[%s1911 + $0x8] sm:$0xff]
    %s1914 = scalar_lea.vmem %s7, 256
    %v1915 = vld [vmem:[%s1914] sm:$0xff]
    %v1916 = vld [vmem:[%s1914 + $0x8] sm:$0xff]
    %v1917 = vsel %vm196, %v1909, 0.0
    %1918 = vadd.xlane.f32.xlu0 %v1917
    %v1919 = vpop.xlane.xlu0 %1918
    %v1920 = vsel %vm196, %v1910, 0.0
    %1921 = vadd.xlane.f32.xlu0 %v1920
    %v1922 = vpop.xlane.xlu0 %1921
    %v1923 = vmul.f32 %v1919, %v1022
    %v1924 = vmul.f32 %v1922, %v1022
    %v1925 = vsub.f32 %v1909, %v1923
    %v1926 = vsub.f32 %v1910, %v1924
    %v1927 = vmul.f32 %v1925, %v1925
    %v1928 = vmul.f32 %v1926, %v1926
    %v1929 = vsel %vm196, %v1927, 0.0
    %1930 = vadd.xlane.f32.xlu0 %v1929
    %v1931 = vpop.xlane.xlu0 %1930
    %v1932 = vsel %vm196, %v1928, 0.0
    %1933 = vadd.xlane.f32.xlu0 %v1932
    %v1934 = vpop.xlane.xlu0 %1933
    %v1935 = vmul.f32 %v1931, %v1022
    %v1936 = vmul.f32 %v1934, %v1022
    %v1937 = vadd.f32 %v1935, 1e-05
    %v1938 = vadd.f32 %v1936, 1e-05
    %v1939 = vrsqrt.pop %v1937
    %v1940 = vrsqrt.pop %v1938
    %v1941 = vmul.f32 %v1925, %v1939
    %v1942 = vmul.f32 %v1926, %v1940
    %v1943 = vmul.f32 %v1941, %v1912
    %v1944 = vmul.f32 %v1942, %v1913
    %v1945 = vadd.f32 %v1943, %v1915
    %v1946 = vadd.f32 %v1944, %v1916
    %s1947 = scalar_lea.vmem [#allocation7], 32
    %v1948 = vld [vmem:[%s1947] sm:$0xff]
    %v1949 = vld [vmem:[%s1947 + $0x8] sm:$0xff]
    %v1950 = vld [vmem:[%s1947 + $0x10] sm:$0xff]
    %v1951 = vld [vmem:[%s1947 + $0x18] sm:$0xff]
    %s1952 = scalar_lea.vmem [#allocation10], 16
    %v1953 = vld [vmem:[%s1952] sm:$0xff]
    %v1954 = vld [vmem:[%s1952 + $0x8] sm:$0xff]
    %v1956 = vsel %vm196, %v1945, 0
    %v1959 = vsel %vm196, %v1946, 0
    %1961 = vmatprep.subr.mxu0 0.0
    %1962 = vmatpush1.msra.mxu0 %v1948
    %1963 = vmatprep.subr.mxu0 0.0
    %1964 = vmatpush1.msra.mxu0 %v1949
    %1965 = vmatprep.subr.mxu0 0.0
    %1966 = vmatpush1.msra.mxu0 %v1950
    %1967 = vmatprep.subr.mxu0 0.0
    %1968 = vmatpush1.msra.mxu0 %v1951
    %1969 = vmatprep.subr.mxu0 0.0
    %1970 = vmatpush1.msra.mxu0 0.0
    %1971 = vmatprep.subr.mxu0 0.0
    %1972 = vmatpush1.msra.mxu0 0.0
    %1973 = vmatprep.subr.mxu0 0.0
    %1974 = vmatpush1.msra.mxu0 0.0
    %1975 = vmatprep.subr.mxu0 0.0
    %1976 = vmatpush1.msra.mxu0 0.0
    %1977 = vmatprep.subr.mxu0 0.0
    %1978 = vmatpush1.msra.mxu0 0.0
    %1979 = vmatprep.subr.mxu0 0.0
    %1980 = vmatpush1.msra.mxu0 0.0
    %1981 = vmatprep.subr.mxu0 0.0
    %1982 = vmatpush1.msra.mxu0 0.0
    %1983 = vmatprep.subr.mxu0 0.0
    %1984 = vmatpush1.msra.mxu0 0.0
    %1985 = vmatprep.subr.mxu0 0.0
    %1986 = vmatpush1.msra.mxu0 0.0
    %1987 = vmatprep.subr.mxu0 0.0
    %1988 = vmatpush1.msra.mxu0 0.0
    %1989 = vmatprep.subr.mxu0 0.0
    %1990 = vmatpush1.msra.mxu0 0.0
    %1991 = vmatprep.subr.mxu0 0.0
    %1992 = vmatpush1.msra.mxu0 0.0
    %1993 = vmatprep.subr.mxu0 0.0
    %1994 = vmatpush1.msra.mxu0 0.0
    %1995 = vmatprep.subr.mxu0 0.0
    %1996 = vmatpush1.msra.mxu0 0.0
    %1997 = vmatprep.subr.mxu0 0.0
    %1998 = vmatpush1.msra.mxu0 0.0
    %1999 = vmatprep.subr.mxu0 0.0
    %2000 = vmatpush1.msra.mxu0 0.0
    %2001 = vmatprep.subr.mxu0 0.0
    %2002 = vmatpush1.msra.mxu0 0.0
    %2003 = vmatprep.subr.mxu0 0.0
    %2004 = vmatpush1.msra.mxu0 0.0
    %2005 = vmatprep.subr.mxu0 0.0
    %2006 = vmatpush1.msra.mxu0 0.0
    %2007 = vmatprep.subr.mxu0 0.0
    %2008 = vmatpush1.msra.mxu0 0.0
    %2009 = vmatprep.subr.mxu0 0.0
    %2010 = vmatpush1.msra.mxu0 0.0
    %2011 = vmatprep.subr.mxu0 0.0
    %2012 = vmatpush1.msra.mxu0 0.0
    %2013 = vmatprep.subr.mxu0 0.0
    %2014 = vmatpush1.msra.mxu0 0.0
    %2015 = vmatprep.subr.mxu0 0.0
    %2016 = vmatpush1.msra.mxu0 0.0
    %2017 = vmatprep.subr.mxu0 0.0
    %2018 = vmatpush1.msra.mxu0 0.0
    %2019 = vmatprep.subr.mxu0 0.0
    %2020 = vmatpush1.msra.mxu0 0.0
    %2021 = vmatprep.subr.mxu0 0.0
    %2022 = vmatpush1.msra.mxu0 0.0
    %2023 = vmatprep.subr.mxu0 0.0
    %2024 = vmatpush1.msra.mxu0 0.0
    %2025 = vmatprep.mubr.f32.mxu0 0.0
    %2026 = vmatmul.mubr.f32.gmra.mrb[0].mxu0 %v1956
    %v2027 = vpop.f32.mrb[0].mxu0
    %v2028 = vadd.f32 %v1953, %v2027
    %v2029 = vpop.f32.mrb[0].mxu0
    %2030 = vmatprep.mubr.f32.mxu0 0.0
    %2031 = vmatmul.mubr.f32.gmra.mrb[0].mxu0 %v1959
    %v2032 = vpop.f32.mrb[0].mxu0
    %v2033 = vadd.f32 %v1954, %v2032
    %v2034 = vpop.f32.mrb[0].mxu0
    %2035 = vdwg.mxu0
    %v2036 = vmax.f32 %v2028, 0.0
    %v2037 = vmax.f32 %v2033, 0.0
    %s2038 = scalar_lea.vmem %s5, 64
    %v2039 = vld [vmem:[%s2038] sm:$0xff]
    %v2040 = vld [vmem:[%s2038 + $0x8] sm:$0xff]
    %v2041 = vld [vmem:[%s2038 + $0x10] sm:$0xff]
    %v2042 = vld [vmem:[%s2038 + $0x18] sm:$0xff]
    %v2043 = vld [vmem:[%s2038 + $0x20] sm:$0xff]
    %v2044 = vld [vmem:[%s2038 + $0x28] sm:$0xff]
    %v2045 = vld [vmem:[%s2038 + $0x30] sm:$0xff]
    %v2046 = vld [vmem:[%s2038 + $0x38] sm:$0xff]
    %s2047 = scalar_lea.vmem %s7, 304
    %v2048 = vld [vmem:[%s2047] sm:$0xff]
    %v2049 = vld [vmem:[%s2047 + $0x8] sm:$0xff]
    %v2051 = vsel %vm741, %v2036, 0
    %v2054 = vsel %vm741, %v2037, 0
    %2056 = vmatprep.subr.mxu0 0.0
    %2057 = vmatpush1.msra.mxu0 %v2039
    %2058 = vmatprep.subr.mxu0 0.0
    %2059 = vmatpush1.msra.mxu0 %v2040
    %2060 = vmatprep.subr.mxu0 0.0
    %2061 = vmatpush1.msra.mxu0 %v2041
    %2062 = vmatprep.subr.mxu0 0.0
    %2063 = vmatpush1.msra.mxu0 %v2042
    %2064 = vmatprep.subr.mxu0 0.0
    %2065 = vmatpush1.msra.mxu0 %v2043
    %2066 = vmatprep.subr.mxu0 0.0
    %2067 = vmatpush1.msra.mxu0 %v2044
    %2068 = vmatprep.subr.mxu0 0.0
    %2069 = vmatpush1.msra.mxu0 %v2045
    %2070 = vmatprep.subr.mxu0 0.0
    %2071 = vmatpush1.msra.mxu0 %v2046
    %2072 = vmatprep.subr.mxu0 0.0
    %2073 = vmatpush1.msra.mxu0 0.0
    %2074 = vmatprep.subr.mxu0 0.0
    %2075 = vmatpush1.msra.mxu0 0.0
    %2076 = vmatprep.subr.mxu0 0.0
    %2077 = vmatpush1.msra.mxu0 0.0
    %2078 = vmatprep.subr.mxu0 0.0
    %2079 = vmatpush1.msra.mxu0 0.0
    %2080 = vmatprep.subr.mxu0 0.0
    %2081 = vmatpush1.msra.mxu0 0.0
    %2082 = vmatprep.subr.mxu0 0.0
    %2083 = vmatpush1.msra.mxu0 0.0
    %2084 = vmatprep.subr.mxu0 0.0
    %2085 = vmatpush1.msra.mxu0 0.0
    %2086 = vmatprep.subr.mxu0 0.0
    %2087 = vmatpush1.msra.mxu0 0.0
    %2088 = vmatprep.subr.mxu0 0.0
    %2089 = vmatpush1.msra.mxu0 0.0
    %2090 = vmatprep.subr.mxu0 0.0
    %2091 = vmatpush1.msra.mxu0 0.0
    %2092 = vmatprep.subr.mxu0 0.0
    %2093 = vmatpush1.msra.mxu0 0.0
    %2094 = vmatprep.subr.mxu0 0.0
    %2095 = vmatpush1.msra.mxu0 0.0
    %2096 = vmatprep.subr.mxu0 0.0
    %2097 = vmatpush1.msra.mxu0 0.0
    %2098 = vmatprep.subr.mxu0 0.0
    %2099 = vmatpush1.msra.mxu0 0.0
    %2100 = vmatprep.subr.mxu0 0.0
    %2101 = vmatpush1.msra.mxu0 0.0
    %2102 = vmatprep.subr.mxu0 0.0
    %2103 = vmatpush1.msra.mxu0 0.0
    %2104 = vmatprep.subr.mxu0 0.0
    %2105 = vmatpush1.msra.mxu0 0.0
    %2106 = vmatprep.subr.mxu0 0.0
    %2107 = vmatpush1.msra.mxu0 0.0
    %2108 = vmatprep.subr.mxu0 0.0
    %2109 = vmatpush1.msra.mxu0 0.0
    %2110 = vmatprep.subr.mxu0 0.0
    %2111 = vmatpush1.msra.mxu0 0.0
    %2112 = vmatprep.subr.mxu0 0.0
    %2113 = vmatpush1.msra.mxu0 0.0
    %2114 = vmatprep.subr.mxu0 0.0
    %2115 = vmatpush1.msra.mxu0 0.0
    %2116 = vmatprep.subr.mxu0 0.0
    %2117 = vmatpush1.msra.mxu0 0.0
    %2118 = vmatprep.subr.mxu0 0.0
    %2119 = vmatpush1.msra.mxu0 0.0
    %2120 = vmatprep.mubr.f32.mxu0 0.0
    %2121 = vmatmul.mubr.f32.gmra.mrb[0].mxu0 %v2051
    %v2122 = vpop.f32.mrb[0].mxu0
    %v2123 = vadd.f32 %v2048, %v2122
    %v2124 = vpop.f32.mrb[0].mxu0
    %2125 = vmatprep.mubr.f32.mxu0 0.0
    %2126 = vmatmul.mubr.f32.gmra.mrb[0].mxu0 %v2054
    %v2127 = vpop.f32.mrb[0].mxu0
    %v2128 = vadd.f32 %v2049, %v2127
    %v2129 = vpop.f32.mrb[0].mxu0
    %2130 = vdwg.mxu0
    %v2131 = vadd.f32 %v1945, %v2123
    %v2132 = vadd.f32 %v1946, %v2128
    %s2133 = scalar_lea.vmem %s7, 272
    %v2134 = vld [vmem:[%s2133] sm:$0xff]
    %v2135 = vld [vmem:[%s2133 + $0x8] sm:$0xff]
    %s2136 = scalar_lea.vmem %s7, 288
    %v2137 = vld [vmem:[%s2136] sm:$0xff]
    %v2138 = vld [vmem:[%s2136 + $0x8] sm:$0xff]
    %v2139 = vsel %vm196, %v2131, 0.0
    %2140 = vadd.xlane.f32.xlu0 %v2139
    %v2141 = vpop.xlane.xlu0 %2140
    %v2142 = vsel %vm196, %v2132, 0.0
    %2143 = vadd.xlane.f32.xlu0 %v2142
    %v2144 = vpop.xlane.xlu0 %2143
    %v2145 = vmul.f32 %v2141, %v1022
    %v2146 = vmul.f32 %v2144, %v1022
    %v2147 = vsub.f32 %v2131, %v2145
    %v2148 = vsub.f32 %v2132, %v2146
    %v2149 = vmul.f32 %v2147, %v2147
    %v2150 = vmul.f32 %v2148, %v2148
    %v2151 = vsel %vm196, %v2149, 0.0
    %2152 = vadd.xlane.f32.xlu0 %v2151
    %v2153 = vpop.xlane.xlu0 %2152
    %v2154 = vsel %vm196, %v2150, 0.0
    %2155 = vadd.xlane.f32.xlu0 %v2154
    %v2156 = vpop.xlane.xlu0 %2155
    %v2157 = vmul.f32 %v2153, %v1022
    %v2158 = vmul.f32 %v2156, %v1022
    %v2159 = vadd.f32 %v2157, 1e-05
    %v2160 = vadd.f32 %v2158, 1e-05
    %v2161 = vrsqrt.pop %v2159
    %v2162 = vrsqrt.pop %v2160
    %v2163 = vmul.f32 %v2147, %v2161
    %v2164 = vmul.f32 %v2148, %v2162
    %v2165 = vmul.f32 %v2163, %v2134
    %v2166 = vmul.f32 %v2164, %v2135
    %v2167 = vadd.f32 %v2165, %v2137
    %v2168 = vadd.f32 %v2166, %v2138
    %v2169 = vld [vmem:[#allocation9] sm:$0xff]
    %v2170 = vld [vmem:[#allocation9 + $0x8] sm:$0xff]
    %v2171 = vld [vmem:[#allocation9 + $0x10] sm:$0xff]
    %v2172 = vld [vmem:[#allocation9 + $0x18] sm:$0xff]
    %v2173 = vld [vmem:[#allocation12] sm:$0xff]
    %v2174 = vld [vmem:[#allocation12 + $0x8] sm:$0xff]
    %v2176 = vsel %vm196, %v2167, 0
    %v2179 = vsel %vm196, %v2168, 0
    %2181 = vmatprep.subr.mxu0 0.0
    %2182 = vmatpush1.msra.mxu0 %v2169
    %2183 = vmatprep.subr.mxu0 0.0
    %2184 = vmatpush1.msra.mxu0 %v2170
    %2185 = vmatprep.subr.mxu0 0.0
    %2186 = vmatpush1.msra.mxu0 %v2171
    %2187 = vmatprep.subr.mxu0 0.0
    %2188 = vmatpush1.msra.mxu0 %v2172
    %2189 = vmatprep.subr.mxu0 0.0
    %2190 = vmatpush1.msra.mxu0 0.0
    %2191 = vmatprep.subr.mxu0 0.0
    %2192 = vmatpush1.msra.mxu0 0.0
    %2193 = vmatprep.subr.mxu0 0.0
    %2194 = vmatpush1.msra.mxu0 0.0
    %2195 = vmatprep.subr.mxu0 0.0
    %2196 = vmatpush1.msra.mxu0 0.0
    %2197 = vmatprep.subr.mxu0 0.0
    %2198 = vmatpush1.msra.mxu0 0.0
    %2199 = vmatprep.subr.mxu0 0.0
    %2200 = vmatpush1.msra.mxu0 0.0
    %2201 = vmatprep.subr.mxu0 0.0
    %2202 = vmatpush1.msra.mxu0 0.0
    %2203 = vmatprep.subr.mxu0 0.0
    %2204 = vmatpush1.msra.mxu0 0.0
    %2205 = vmatprep.subr.mxu0 0.0
    %2206 = vmatpush1.msra.mxu0 0.0
    %2207 = vmatprep.subr.mxu0 0.0
    %2208 = vmatpush1.msra.mxu0 0.0
    %2209 = vmatprep.subr.mxu0 0.0
    %2210 = vmatpush1.msra.mxu0 0.0
    %2211 = vmatprep.subr.mxu0 0.0
    %2212 = vmatpush1.msra.mxu0 0.0
    %2213 = vmatprep.subr.mxu0 0.0
    %2214 = vmatpush1.msra.mxu0 0.0
    %2215 = vmatprep.subr.mxu0 0.0
    %2216 = vmatpush1.msra.mxu0 0.0
    %2217 = vmatprep.subr.mxu0 0.0
    %2218 = vmatpush1.msra.mxu0 0.0
    %2219 = vmatprep.subr.mxu0 0.0
    %2220 = vmatpush1.msra.mxu0 0.0
    %2221 = vmatprep.subr.mxu0 0.0
    %2222 = vmatpush1.msra.mxu0 0.0
    %2223 = vmatprep.subr.mxu0 0.0
    %2224 = vmatpush1.msra.mxu0 0.0
    %2225 = vmatprep.subr.mxu0 0.0
    %2226 = vmatpush1.msra.mxu0 0.0
    %2227 = vmatprep.subr.mxu0 0.0
    %2228 = vmatpush1.msra.mxu0 0.0
    %2229 = vmatprep.subr.mxu0 0.0
    %2230 = vmatpush1.msra.mxu0 0.0
    %2231 = vmatprep.subr.mxu0 0.0
    %2232 = vmatpush1.msra.mxu0 0.0
    %2233 = vmatprep.subr.mxu0 0.0
    %2234 = vmatpush1.msra.mxu0 0.0
    %2235 = vmatprep.subr.mxu0 0.0
    %2236 = vmatpush1.msra.mxu0 0.0
    %2237 = vmatprep.subr.mxu0 0.0
    %2238 = vmatpush1.msra.mxu0 0.0
    %2239 = vmatprep.subr.mxu0 0.0
    %2240 = vmatpush1.msra.mxu0 0.0
    %2241 = vmatprep.subr.mxu0 0.0
    %2242 = vmatpush1.msra.mxu0 0.0
    %2243 = vmatprep.subr.mxu0 0.0
    %2244 = vmatpush1.msra.mxu0 0.0
    %2245 = vmatprep.mubr.f32.mxu0 0.0
    %2246 = vmatmul.mubr.f32.gmra.mrb[0].mxu0 %v2176
    %v2247 = vpop.f32.mrb[0].mxu0
    %v2248 = vadd.f32 %v2173, %v2247
    %v2249 = vpop.f32.mrb[0].mxu0
    %2250 = vmatprep.mubr.f32.mxu0 0.0
    %2251 = vmatmul.mubr.f32.gmra.mrb[0].mxu0 %v2179
    %v2252 = vpop.f32.mrb[0].mxu0
    %v2253 = vadd.f32 %v2174, %v2252
    %v2254 = vpop.f32.mrb[0].mxu0
    %2255 = vdwg.mxu0
    %v2256 = vlaneseq
    %v2257 = vand.u32 %v2256, 127
    %vm2258 = vcmp.lt.s32.totalorder %v2257, 4
    %v2259 = vmul.f32 %v2248, %v2248
    %v2260 = vmul.f32 %v2253, %v2253
    %v2261 = vsel %vm2258, %v2259, 0.0
    %v2262 = vsel %vm2258, %v2260, 0.0
    %2263 = vadd.xlane.f32.xlu0 %v2261
    %v2264 = vpop.xlane.xlu0 %2263
    %2265 = vadd.xlane.f32.xlu0 %v2262
    %v2266 = vpop.xlane.xlu0 %2265
    %v2267 = vadd.f32 %v2264, 1e-12
    %v2268 = vadd.f32 %v2266, 1e-12
    %v2269 = vrsqrt.pop %v2267
    %v2270 = vrsqrt.pop %v2268
    %v2271 = vmul.f32 %v2248, %v2269
    %v2272 = vmul.f32 %v2253, %v2270
    %v2273 = vsel %vm2258, %v2271, %v2248
    %v2274 = vsel %vm2258, %v2272, %v2253
    %2275 = vst [vmem:[%s13] sm:$0xff] %v2273
    %2276 = vst [vmem:[%s13 + $0x8] sm:$0xff] %v2274
    // Predicated region
    $region90: #{rotation_head_forward.1} parent=1 // pred_check
      _
    $region91: #{rotation_head_forward.1} parent=1 // pred_check_branch
      %2278 = sbr.rel (0) target = $region93
    $region92: #{rotation_head_forward.1} parent=1 // pred_region
      _
    $region93: #{rotation_head_forward.1} parent=1 // pred_fallthru
      _
    // Predicated region
    $region94: #{rotation_head_forward.1} parent=1 // pred_check
      _
    $region95: #{rotation_head_forward.1} parent=1 // pred_check_branch
      %2280 = sbr.rel (0) target = $region97
    $region96: #{rotation_head_forward.1} parent=1 // pred_region
      _
    $region97: #{rotation_head_forward.1} parent=1 // pred_fallthru
      _
    %2281 = vsyncpa [#allocation3], 1
    %2282 = vsyncpa [#allocation5], 1
    %2283 = vsyncpa [#allocation8], 1
    %2284 = vsyncpa [#allocation11], 1
    %2285 = vsyncpa [#allocation14], 1

</llo_original>
